<compile_context>
chip_gen: v7x
topology: tpu7x:2x2x1
jax: 0.10.0
libtpu: 0.0.40
codegen_flags: <defaults>
</compile_context>

<pallas_src>
import functools

import jax
import jax.numpy as jnp
from jax.experimental import pallas as pl
from jax.experimental.pallas import tpu as pltpu


def _round_up(x, m):
    return ((x + m - 1) // m) * m


def base_network_kernel(x_ref, adj_ref, pool_ref,
                        w_c0_ref, b_c0_ref,
                        w_conv_ref, b_conv_ref,
                        w_ro_ref, b_ro_ref,
                        w_out_ref, b_out_ref,
                        out_ref,
                        *, n_rest_convs, readout_layers):
    # x_ref:    (M, F)    bf16  flat node slab for Bt graphs (M = Bt*N)
    # adj_ref:  (1, M, M) bf16  block-diagonal row-normalized adjacency
    # pool_ref: (Bt, M)   bf16  mean-pooling matrix (1/N per own-graph node)
    adj = adj_ref[0]                       # (M, M)
    x = x_ref[...]                         # (M, F)

    # --- embedding fused into the first convolution (single GEMM chain) ---
    # relu(A (x We + be) W1 + b1) == relu((A x)(We W1) + (be W1 + b1))
    ax = jnp.dot(adj, x, preferred_element_type=jnp.float32)             # (M, F)
    h = jnp.dot(ax.astype(jnp.bfloat16), w_c0_ref[...],
                preferred_element_type=jnp.float32)
    h = jnp.maximum(h + b_c0_ref[...], 0.0)                              # (M, Dp) f32
    h_bf = h.astype(jnp.bfloat16)                                        # one cast/producer

    # --- remaining graph convolutions: H <- relu(A @ H @ W_k + b_k) ---
    for k in range(n_rest_convs):
        m = jnp.dot(adj, h_bf, preferred_element_type=jnp.float32)       # block-diag A@H
        h = jnp.dot(m.astype(jnp.bfloat16), w_conv_ref[k],
                    preferred_element_type=jnp.float32)
        h = jnp.maximum(h + b_conv_ref[k], 0.0)
        h_bf = h.astype(jnp.bfloat16)

    # --- mean node readout as a pooling GEMM (rides the otherwise-idle MXU) ---
    # TODO(synk): divides by padded node count N; ragged graphs need a mask.
    g = jnp.dot(pool_ref[...], h_bf, preferred_element_type=jnp.float32)  # (Bt, Dp)

    # --- readout MLP ---
    for l in range(readout_layers):
        g = jnp.dot(g.astype(jnp.bfloat16), w_ro_ref[l],
                    preferred_element_type=jnp.float32)
        g = jnp.maximum(g + b_ro_ref[l], 0.0)

    # --- classifier head, lane-dense (Bt, Cp) store ---
    logits = jnp.dot(g.astype(jnp.bfloat16), w_out_ref[...],
                     preferred_element_type=jnp.float32) + b_out_ref[...]
    out_ref[...] = logits.astype(out_ref.dtype)


def base_network_forward(x, adj, params, *, n_convolutions, readout_layers,
                         graphs_per_step=32):
    # TODO(synk): on v5e, graphs_per_step=16 (Bt*N=128) matches its 128-wide MXU;
    #             default 32 targets the 256-wide v6e/v7x arrays.
    B, N, F = x.shape
    D = params["w_emb"].shape[1]
    C = params["w_out"].shape[1]

    Dp = _round_up(D, 128)             # lane-pad embedding dim
    Cp = _round_up(C, 128)             # lane-pad class dim (unmasked output stores)
    Bt = graphs_per_step
    B_pad = _round_up(B, 2 * Bt)       # even #steps -> both v7x TensorCores busy
    n_steps = B_pad // Bt
    M = Bt * N

    # ---------- operand prep (plain-JAX glue, once per call) ----------
    xb = jnp.pad(x, ((0, B_pad - B), (0, 0), (0, 0))).astype(jnp.bfloat16)
    x2d = xb.reshape(B_pad * N, F)                                    # flat node slab

    adjp = jnp.pad(adj, ((0, B_pad - B), (0, 0), (0, 0)))
    adj_steps = adjp.reshape(n_steps, Bt, N, N)
    eye = jnp.eye(Bt, dtype=adjp.dtype)
    adj_bd = jnp.einsum("ij,sinm->sinjm", eye, adj_steps)             # block-diag
    adj_bd = adj_bd.reshape(n_steps, M, M).astype(jnp.bfloat16)

    pool = (jnp.kron(jnp.eye(Bt, dtype=jnp.float32),
                     jnp.ones((1, N), jnp.float32)) / N).astype(jnp.bfloat16)

    # Fuse embedding into the first conv (f32 math), then lane-pad.
    we = params["w_emb"].astype(jnp.float32)                          # (F, D)
    w1 = params["w_conv"][0].astype(jnp.float32)                      # (D, D)
    pD = Dp - D
    w_c0 = jnp.pad(we @ w1, ((0, 0), (0, pD))).astype(jnp.bfloat16)   # (F, Dp)
    b_c0 = jnp.pad(params["b_emb"].astype(jnp.float32) @ w1
                   + params["b_conv"][0].astype(jnp.float32),
                   ((0, 0), (0, pD)))                                 # (1, Dp) f32

    n_rest = n_convolutions - 1
    if n_rest > 0:
        w_rest = jnp.pad(params["w_conv"][1:],
                         ((0, 0), (0, pD), (0, pD))).astype(jnp.bfloat16)
        b_rest = jnp.pad(params["b_conv"][1:],
                         ((0, 0), (0, 0), (0, pD))).astype(jnp.float32)
    else:
        w_rest = jnp.zeros((1, Dp, Dp), jnp.bfloat16)
        b_rest = jnp.zeros((1, 1, Dp), jnp.float32)

    if readout_layers > 0:
        w_ro = jnp.pad(params["w_ro"],
                       ((0, 0), (0, pD), (0, pD))).astype(jnp.bfloat16)
        b_ro = jnp.pad(params["b_ro"],
                       ((0, 0), (0, 0), (0, pD))).astype(jnp.float32)
    else:
        w_ro = jnp.zeros((1, Dp, Dp), jnp.bfloat16)
        b_ro = jnp.zeros((1, 1, Dp), jnp.float32)

    w_out = jnp.pad(params["w_out"],
                    ((0, pD), (0, Cp - C))).astype(jnp.bfloat16)      # (Dp, Cp)
    b_out = jnp.pad(params["b_out"],
                    ((0, 0), (0, Cp - C))).astype(jnp.float32)        # (1, Cp)

    kernel = functools.partial(base_network_kernel,
                               n_rest_convs=n_rest,
                               readout_layers=readout_layers)

    # Advisory cost estimate for the XLA scheduler.
    flops_per_step = (
        2 * M * M * F                          # block-diag A @ x
        + 2 * M * F * Dp                       # fused embedding / first conv
        + n_rest * (2 * M * M * Dp + 2 * M * Dp * Dp)
        + 2 * Bt * M * Dp                      # pooling GEMM
        + readout_layers * 2 * Bt * Dp * Dp
        + 2 * Bt * Dp * Cp
    )
    weight_bytes = sum(int(a.size) * a.dtype.itemsize for a in
                       (pool, w_c0, b_c0, w_rest, b_rest, w_ro, b_ro, w_out, b_out))
    cost = pl.CostEstimate(
        flops=int(n_steps * flops_per_step),
        transcendentals=0,
        bytes_accessed=int(x2d.size * 2 + adj_bd.size * 2 + weight_bytes
                           + B_pad * Cp * 4),
    )

    grid_spec = pltpu.PrefetchScalarGridSpec(
        num_scalar_prefetch=0,
        grid=(n_steps,),
        in_specs=[
            pl.BlockSpec((M, F), lambda b: (b, 0)),                        # x slab
            pl.BlockSpec((1, M, M), lambda b: (b, 0, 0)),                  # block-diag adj
            pl.BlockSpec((Bt, M), lambda b: (0, 0)),                       # pooling matrix
            pl.BlockSpec((F, Dp), lambda b: (0, 0)),                       # fused W0
            pl.BlockSpec((1, Dp), lambda b: (0, 0)),                       # fused b0
            pl.BlockSpec((w_rest.shape[0], Dp, Dp), lambda b: (0, 0, 0)),  # W_conv[1:]
            pl.BlockSpec((b_rest.shape[0], 1, Dp), lambda b: (0, 0, 0)),   # b_conv[1:]
            pl.BlockSpec((w_ro.shape[0], Dp, Dp), lambda b: (0, 0, 0)),    # W_ro
            pl.BlockSpec((b_ro.shape[0], 1, Dp), lambda b: (0, 0, 0)),     # b_ro
            pl.BlockSpec((Dp, Cp), lambda b: (0, 0)),                      # W_out
            pl.BlockSpec((1, Cp), lambda b: (0, 0)),                       # b_out
        ],
        out_specs=pl.BlockSpec((Bt, Cp), lambda b: (b, 0)),
    )

    out = pl.pallas_call(
        kernel,
        out_shape=jax.ShapeDtypeStruct((B_pad, Cp), jnp.float32),
        grid_spec=grid_spec,
        compiler_params=pltpu.CompilerParams(
            dimension_semantics=("parallel",),
        ),
        cost_estimate=cost,
    )(x2d, adj_bd, pool,
      w_c0, b_c0, w_rest, b_rest, w_ro, b_ro, w_out, b_out)

    return out[:B, :C]


def base_network_reference(x, adj, params, *, n_convolutions, readout_layers):
    """Pure-JAX reference: UNFUSED original math, bf16 MXU inputs / f32 accum."""
    xb = x.astype(jnp.bfloat16)
    ab = adj.astype(jnp.bfloat16)
    h = jnp.einsum("bnf,fd->bnd", xb, params["w_emb"],
                   preferred_element_type=jnp.float32) + params["b_emb"]
    for k in range(n_convolutions):
        m = jnp.einsum("bnm,bmd->bnd", ab, h.astype(jnp.bfloat16),
                       preferred_element_type=jnp.float32)
        h = jax.nn.relu(
            jnp.einsum("bnd,de->bne", m.astype(jnp.bfloat16),
                       params["w_conv"][k],
                       preferred_element_type=jnp.float32)
            + params["b_conv"][k])
    g = jnp.mean(h, axis=1)  # (B, D)
    # TODO(synk): mean divides by padded N; a real subclass may mask dummy nodes.
    for l in range(readout_layers):
        g = jax.nn.relu(
            jnp.dot(g.astype(jnp.bfloat16), params["w_ro"][l],
                    preferred_element_type=jnp.float32)
            + params["b_ro"][l][0])
    return (jnp.dot(g.astype(jnp.bfloat16), params["w_out"],
                    preferred_element_type=jnp.float32)
            + params["b_out"][0])


def init_params(key, n_node_features, embedding_dim, n_convolutions,
                readout_layers, n_classes):
    ks = jax.random.split(key, 8)
    F, D, C = n_node_features, embedding_dim, n_classes
    s = 0.1

    def w(k, shape):  # bf16 weights for MXU inputs
        return (s * jax.random.normal(k, shape, jnp.float32)).astype(jnp.bfloat16)

    def b(k, shape):  # f32 biases (added in f32 on the VPU)
        return s * jax.random.normal(k, shape, jnp.float32)

    return {
        "w_emb": w(ks[0], (F, D)),
        "b_emb": b(ks[1], (1, D)),
        "w_conv": w(ks[2], (n_convolutions, D, D)),
        "b_conv": b(ks[3], (n_convolutions, 1, D)),
        "w_ro": w(ks[4], (readout_layers, D, D)),
        "b_ro": b(ks[5], (readout_layers, 1, D)),
        "w_out": w(ks[6], (D, C)),
        "b_out": b(ks[7], (1, C)),
    }


if __name__ == "__main__":
    # Hyper-parameters implied by BaseNetwork.__init__ (small synthetic sizes).
    B = 128               # batch of graphs -> 4 grid steps of 32 (2 per v7x TC)
    N = 8                 # nodes per graph (padded)
    n_node_features = 8
    embedding_dim = 32
    n_convolutions = 2
    readout_layers = 2
    n_classes = 4
    graphs_per_step = 32  # Bt*N = 256 fills the v6e/v7x MXU contraction dim

    key = jax.random.PRNGKey(0)
    k_x, k_a, k_p = jax.random.split(key, 3)

    x = jax.random.normal(k_x, (B, N, n_node_features), jnp.float32)

    # Random symmetric adjacency with self-loops, row-normalized (plain-JAX glue).
    a = (jax.random.uniform(k_a, (B, N, N)) < 0.3).astype(jnp.float32)
    a = jnp.maximum(a, jnp.transpose(a, (0, 2, 1)))
    a = a + jnp.eye(N, dtype=jnp.float32)[None]
    adj = a / jnp.sum(a, axis=-1, keepdims=True)

    params = init_params(k_p, n_node_features, embedding_dim, n_convolutions,
                         readout_layers, n_classes)

    out = base_network_forward(x, adj, params,
                               n_convolutions=n_convolutions,
                               readout_layers=readout_layers,
                               graphs_per_step=graphs_per_step)
    out = jax.block_until_ready(out)

    ref = base_network_reference(x, adj, params,
                                 n_convolutions=n_convolutions,
                                 readout_layers=readout_layers)
    assert out.shape == (B, n_classes)
    assert jnp.allclose(out, ref, atol=2e-2, rtol=2e-2), (out, ref)

    print("KERNEL_OK")
</pallas_src>

<mosaic_0001>
module attributes {stable_mosaic.version = 11 : i64} {
  func.func @base_network_kernel(%arg0: i32, %arg1: memref<256x8xbf16, #tpu.memory_space<vmem>>, %arg2: memref<1x256x256xbf16, #tpu.memory_space<vmem>>, %arg3: memref<32x256xbf16, #tpu.memory_space<vmem>>, %arg4: memref<8x128xbf16, #tpu.memory_space<vmem>>, %arg5: memref<1x128xf32, #tpu.memory_space<vmem>>, %arg6: memref<1x128x128xbf16, #tpu.memory_space<vmem>>, %arg7: memref<1x1x128xf32, #tpu.memory_space<vmem>>, %arg8: memref<2x128x128xbf16, #tpu.memory_space<vmem>>, %arg9: memref<2x1x128xf32, #tpu.memory_space<vmem>>, %arg10: memref<128x128xbf16, #tpu.memory_space<vmem>>, %arg11: memref<1x128xf32, #tpu.memory_space<vmem>>, %arg12: memref<32x128xf32, #tpu.memory_space<vmem>>) attributes {dimension_semantics = [#tpu.dimension_semantics<parallel>], iteration_bounds = array<i64: 4>, scalar_prefetch = 0 : i64, scratch_operands = 0 : i64, tpu.core_type = #tpu.core_type<tc>, window_params = [{transform_indices = @transform_0, window_bounds = array<i64: 256, 8>}, {transform_indices = @transform_1, window_bounds = array<i64: 1, 256, 256>}, {pipeline_mode = #tpu.pipeline_mode<synchronous>, transform_indices = @transform_2, window_bounds = array<i64: 32, 256>}, {pipeline_mode = #tpu.pipeline_mode<synchronous>, transform_indices = @transform_3, window_bounds = array<i64: 8, 128>}, {pipeline_mode = #tpu.pipeline_mode<synchronous>, transform_indices = @transform_4, window_bounds = array<i64: 1, 128>}, {pipeline_mode = #tpu.pipeline_mode<synchronous>, transform_indices = @transform_5, window_bounds = array<i64: 1, 128, 128>}, {pipeline_mode = #tpu.pipeline_mode<synchronous>, transform_indices = @transform_6, window_bounds = array<i64: 1, 1, 128>}, {pipeline_mode = #tpu.pipeline_mode<synchronous>, transform_indices = @transform_7, window_bounds = array<i64: 2, 128, 128>}, {pipeline_mode = #tpu.pipeline_mode<synchronous>, transform_indices = @transform_8, window_bounds = array<i64: 2, 1, 128>}, {pipeline_mode = #tpu.pipeline_mode<synchronous>, transform_indices = @transform_9, window_bounds = array<i64: 128, 128>}, {pipeline_mode = #tpu.pipeline_mode<synchronous>, transform_indices = @transform_10, window_bounds = array<i64: 1, 128>}, {transform_indices = @transform_11, window_bounds = array<i64: 32, 128>}]} {
    %c0 = arith.constant 0 : index
    %c0_0 = arith.constant 0 : index
    %c0_1 = arith.constant 0 : index
    %0 = vector.load %arg2[%c0, %c0_0, %c0_1] : memref<1x256x256xbf16, #tpu.memory_space<vmem>>, vector<1x256x256xbf16>
    %1 = vector.shape_cast %0 : vector<1x256x256xbf16> to vector<256x256xbf16>
    %c0_2 = arith.constant 0 : index
    %c0_3 = arith.constant 0 : index
    %2 = vector.load %arg1[%c0_2, %c0_3] : memref<256x8xbf16, #tpu.memory_space<vmem>>, vector<256x8xbf16>
    %cst = arith.constant dense<0.000000e+00> : vector<256x8xf32>
    %3 = tpu.matmul %1, %2, %cst {dimension_numbers = #tpu.dot_dimension_numbers<[1], [0], [0], [1], [0, 0, 1, 1], [], []>} : vector<256x256xbf16>, vector<256x8xbf16>, vector<256x8xf32> -> vector<256x8xf32>
    %4 = arith.truncf %3 : vector<256x8xf32> to vector<256x8xbf16>
    %c0_4 = arith.constant 0 : index
    %c0_5 = arith.constant 0 : index
    %5 = vector.load %arg4[%c0_4, %c0_5] : memref<8x128xbf16, #tpu.memory_space<vmem>>, vector<8x128xbf16>
    %cst_6 = arith.constant dense<0.000000e+00> : vector<256x128xf32>
    %6 = tpu.matmul %4, %5, %cst_6 {dimension_numbers = #tpu.dot_dimension_numbers<[1], [0], [0], [1], [0, 0, 1, 1], [], []>} : vector<256x8xbf16>, vector<8x128xbf16>, vector<256x128xf32> -> vector<256x128xf32>
    %c0_7 = arith.constant 0 : index
    %c0_8 = arith.constant 0 : index
    %7 = vector.load %arg5[%c0_7, %c0_8] : memref<1x128xf32, #tpu.memory_space<vmem>>, vector<1x128xf32>
    %8 = vector.broadcast %7 : vector<1x128xf32> to vector<256x128xf32>
    %9 = arith.addf %6, %8 : vector<256x128xf32>
    %cst_9 = arith.constant 0.000000e+00 : f32
    %10 = vector.broadcast %cst_9 : f32 to vector<256x128xf32>
    %11 = arith.maximumf %9, %10 : vector<256x128xf32>
    %12 = arith.truncf %11 : vector<256x128xf32> to vector<256x128xbf16>
    %cst_10 = arith.constant dense<0.000000e+00> : vector<256x128xf32>
    %13 = tpu.matmul %1, %12, %cst_10 {dimension_numbers = #tpu.dot_dimension_numbers<[1], [0], [0], [1], [0, 0, 1, 1], [], []>} : vector<256x256xbf16>, vector<256x128xbf16>, vector<256x128xf32> -> vector<256x128xf32>
    %14 = arith.truncf %13 : vector<256x128xf32> to vector<256x128xbf16>
    %c0_11 = arith.constant 0 : index
    %c0_12 = arith.constant 0 : index
    %c0_13 = arith.constant 0 : index
    %15 = vector.load %arg6[%c0_11, %c0_12, %c0_13] : memref<1x128x128xbf16, #tpu.memory_space<vmem>>, vector<1x128x128xbf16>
    %16 = vector.shape_cast %15 : vector<1x128x128xbf16> to vector<128x128xbf16>
    %cst_14 = arith.constant dense<0.000000e+00> : vector<256x128xf32>
    %17 = tpu.matmul %14, %16, %cst_14 {dimension_numbers = #tpu.dot_dimension_numbers<[1], [0], [0], [1], [0, 0, 1, 1], [], []>} : vector<256x128xbf16>, vector<128x128xbf16>, vector<256x128xf32> -> vector<256x128xf32>
    %c0_15 = arith.constant 0 : index
    %c0_16 = arith.constant 0 : index
    %c0_17 = arith.constant 0 : index
    %18 = vector.load %arg7[%c0_15, %c0_16, %c0_17] : memref<1x1x128xf32, #tpu.memory_space<vmem>>, vector<1x1x128xf32>
    %19 = vector.shape_cast %18 : vector<1x1x128xf32> to vector<1x128xf32>
    %20 = vector.broadcast %19 : vector<1x128xf32> to vector<256x128xf32>
    %21 = arith.addf %17, %20 : vector<256x128xf32>
    %cst_18 = arith.constant 0.000000e+00 : f32
    %22 = vector.broadcast %cst_18 : f32 to vector<256x128xf32>
    %23 = arith.maximumf %21, %22 : vector<256x128xf32>
    %24 = arith.truncf %23 : vector<256x128xf32> to vector<256x128xbf16>
    %c0_19 = arith.constant 0 : index
    %c0_20 = arith.constant 0 : index
    %25 = vector.load %arg3[%c0_19, %c0_20] : memref<32x256xbf16, #tpu.memory_space<vmem>>, vector<32x256xbf16>
    %cst_21 = arith.constant dense<0.000000e+00> : vector<32x128xf32>
    %26 = tpu.matmul %25, %24, %cst_21 {dimension_numbers = #tpu.dot_dimension_numbers<[1], [0], [0], [1], [0, 0, 1, 1], [], []>} : vector<32x256xbf16>, vector<256x128xbf16>, vector<32x128xf32> -> vector<32x128xf32>
    %27 = arith.truncf %26 : vector<32x128xf32> to vector<32x128xbf16>
    %c0_22 = arith.constant 0 : index
    %c0_23 = arith.constant 0 : index
    %c0_24 = arith.constant 0 : index
    %28 = vector.load %arg8[%c0_22, %c0_23, %c0_24] : memref<2x128x128xbf16, #tpu.memory_space<vmem>>, vector<1x128x128xbf16>
    %29 = vector.shape_cast %28 : vector<1x128x128xbf16> to vector<128x128xbf16>
    %cst_25 = arith.constant dense<0.000000e+00> : vector<32x128xf32>
    %30 = tpu.matmul %27, %29, %cst_25 {dimension_numbers = #tpu.dot_dimension_numbers<[1], [0], [0], [1], [0, 0, 1, 1], [], []>} : vector<32x128xbf16>, vector<128x128xbf16>, vector<32x128xf32> -> vector<32x128xf32>
    %c0_26 = arith.constant 0 : index
    %c0_27 = arith.constant 0 : index
    %c0_28 = arith.constant 0 : index
    %31 = vector.load %arg9[%c0_26, %c0_27, %c0_28] : memref<2x1x128xf32, #tpu.memory_space<vmem>>, vector<1x1x128xf32>
    %32 = vector.shape_cast %31 : vector<1x1x128xf32> to vector<1x128xf32>
    %33 = vector.broadcast %32 : vector<1x128xf32> to vector<32x128xf32>
    %34 = arith.addf %30, %33 : vector<32x128xf32>
    %cst_29 = arith.constant 0.000000e+00 : f32
    %35 = vector.broadcast %cst_29 : f32 to vector<32x128xf32>
    %36 = arith.maximumf %34, %35 : vector<32x128xf32>
    %37 = arith.truncf %36 : vector<32x128xf32> to vector<32x128xbf16>
    %c1 = arith.constant 1 : index
    %c0_30 = arith.constant 0 : index
    %c0_31 = arith.constant 0 : index
    %38 = vector.load %arg8[%c1, %c0_30, %c0_31] : memref<2x128x128xbf16, #tpu.memory_space<vmem>>, vector<1x128x128xbf16>
    %39 = vector.shape_cast %38 : vector<1x128x128xbf16> to vector<128x128xbf16>
    %cst_32 = arith.constant dense<0.000000e+00> : vector<32x128xf32>
    %40 = tpu.matmul %37, %39, %cst_32 {dimension_numbers = #tpu.dot_dimension_numbers<[1], [0], [0], [1], [0, 0, 1, 1], [], []>} : vector<32x128xbf16>, vector<128x128xbf16>, vector<32x128xf32> -> vector<32x128xf32>
    %c1_33 = arith.constant 1 : index
    %c0_34 = arith.constant 0 : index
    %c0_35 = arith.constant 0 : index
    %41 = vector.load %arg9[%c1_33, %c0_34, %c0_35] : memref<2x1x128xf32, #tpu.memory_space<vmem>>, vector<1x1x128xf32>
    %42 = vector.shape_cast %41 : vector<1x1x128xf32> to vector<1x128xf32>
    %43 = vector.broadcast %42 : vector<1x128xf32> to vector<32x128xf32>
    %44 = arith.addf %40, %43 : vector<32x128xf32>
    %cst_36 = arith.constant 0.000000e+00 : f32
    %45 = vector.broadcast %cst_36 : f32 to vector<32x128xf32>
    %46 = arith.maximumf %44, %45 : vector<32x128xf32>
    %47 = arith.truncf %46 : vector<32x128xf32> to vector<32x128xbf16>
    %c0_37 = arith.constant 0 : index
    %c0_38 = arith.constant 0 : index
    %48 = vector.load %arg10[%c0_37, %c0_38] : memref<128x128xbf16, #tpu.memory_space<vmem>>, vector<128x128xbf16>
    %cst_39 = arith.constant dense<0.000000e+00> : vector<32x128xf32>
    %49 = tpu.matmul %47, %48, %cst_39 {dimension_numbers = #tpu.dot_dimension_numbers<[1], [0], [0], [1], [0, 0, 1, 1], [], []>} : vector<32x128xbf16>, vector<128x128xbf16>, vector<32x128xf32> -> vector<32x128xf32>
    %c0_40 = arith.constant 0 : index
    %c0_41 = arith.constant 0 : index
    %50 = vector.load %arg11[%c0_40, %c0_41] : memref<1x128xf32, #tpu.memory_space<vmem>>, vector<1x128xf32>
    %51 = vector.broadcast %50 : vector<1x128xf32> to vector<32x128xf32>
    %52 = arith.addf %49, %51 : vector<32x128xf32>
    %c0_42 = arith.constant 0 : index
    %c0_43 = arith.constant 0 : index
    %53 = vector.load %arg12[%c0_42, %c0_43] : memref<32x128xf32, #tpu.memory_space<vmem>>, vector<32x128xf32>
    tpu.vector_store %arg12[%c0_42, %c0_43], %52 {strides = array<i32>} : memref<32x128xf32, #tpu.memory_space<vmem>>, vector<32x128xf32>,
    return
  }
  func.func @transform_0(%arg0: i32) -> (i32, i32) {
    %c0_i32 = arith.constant 0 : i32
    %c0_i32_0 = arith.constant 0 : i32
    return %arg0, %c0_i32 : i32, i32
  }
  func.func @transform_1(%arg0: i32) -> (i32, i32, i32) {
    %c0_i32 = arith.constant 0 : i32
    %c0_i32_0 = arith.constant 0 : i32
    %c0_i32_1 = arith.constant 0 : i32
    return %arg0, %c0_i32, %c0_i32_0 : i32, i32, i32
  }
  func.func @transform_2(%arg0: i32) -> (i32, i32) {
    %c0_i32 = arith.constant 0 : i32
    %c0_i32_0 = arith.constant 0 : i32
    %c0_i32_1 = arith.constant 0 : i32
    return %c0_i32, %c0_i32_0 : i32, i32
  }
  func.func @transform_3(%arg0: i32) -> (i32, i32) {
    %c0_i32 = arith.constant 0 : i32
    %c0_i32_0 = arith.constant 0 : i32
    %c0_i32_1 = arith.constant 0 : i32
    return %c0_i32, %c0_i32_0 : i32, i32
  }
  func.func @transform_4(%arg0: i32) -> (i32, i32) {
    %c0_i32 = arith.constant 0 : i32
    %c0_i32_0 = arith.constant 0 : i32
    %c0_i32_1 = arith.constant 0 : i32
    return %c0_i32, %c0_i32_0 : i32, i32
  }
  func.func @transform_5(%arg0: i32) -> (i32, i32, i32) {
    %c0_i32 = arith.constant 0 : i32
    %c0_i32_0 = arith.constant 0 : i32
    %c0_i32_1 = arith.constant 0 : i32
    %c0_i32_2 = arith.constant 0 : i32
    return %c0_i32, %c0_i32_0, %c0_i32_1 : i32, i32, i32
  }
  func.func @transform_6(%arg0: i32) -> (i32, i32, i32) {
    %c0_i32 = arith.constant 0 : i32
    %c0_i32_0 = arith.constant 0 : i32
    %c0_i32_1 = arith.constant 0 : i32
    %c0_i32_2 = arith.constant 0 : i32
    return %c0_i32, %c0_i32_0, %c0_i32_1 : i32, i32, i32
  }
  func.func @transform_7(%arg0: i32) -> (i32, i32, i32) {
    %c0_i32 = arith.constant 0 : i32
    %c0_i32_0 = arith.constant 0 : i32
    %c0_i32_1 = arith.constant 0 : i32
    %c0_i32_2 = arith.constant 0 : i32
    return %c0_i32, %c0_i32_0, %c0_i32_1 : i32, i32, i32
  }
  func.func @transform_8(%arg0: i32) -> (i32, i32, i32) {
    %c0_i32 = arith.constant 0 : i32
    %c0_i32_0 = arith.constant 0 : i32
    %c0_i32_1 = arith.constant 0 : i32
    %c0_i32_2 = arith.constant 0 : i32
    return %c0_i32, %c0_i32_0, %c0_i32_1 : i32, i32, i32
  }
  func.func @transform_9(%arg0: i32) -> (i32, i32) {
    %c0_i32 = arith.constant 0 : i32
    %c0_i32_0 = arith.constant 0 : i32
    %c0_i32_1 = arith.constant 0 : i32
    return %c0_i32, %c0_i32_0 : i32, i32
  }
  func.func @transform_10(%arg0: i32) -> (i32, i32) {
    %c0_i32 = arith.constant 0 : i32
    %c0_i32_0 = arith.constant 0 : i32
    %c0_i32_1 = arith.constant 0 : i32
    return %c0_i32, %c0_i32_0 : i32, i32
  }
  func.func @transform_11(%arg0: i32) -> (i32, i32) {
    %c0_i32 = arith.constant 0 : i32
    %c0_i32_0 = arith.constant 0 : i32
    return %arg0, %c0_i32 : i32, i32
  }
}

</mosaic_0001>

<llo_original>
// kernel: tpu_custom_call.1
$region0: #{tpu_custom_call.1}
  #allocation0 [shape = 'u32[]', space=smem, size = 0x4, offset = 0x4, fixed_abs, tag = 'smem constant byte address 0x4 - core index']
  #allocation1 [shape = 'u32[144,128]{1,0:T(1,128)}', space=vmem, size = 0x12000, scoped, tag = 'internal scratch']
  %s0 = inlined_call_operand.vmem [shape: bf16[1024,8], index: 0, kind: input, shape index: {}]
  %s1 = inlined_call_operand.hbm [shape: bf16[4,256,256], index: 1, kind: input, shape index: {}]
  %s2 = inlined_call_operand.vmem [shape: bf16[32,256], index: 2, kind: input, shape index: {}]
  %s3 = inlined_call_operand.vmem [shape: bf16[8,128], index: 3, kind: input, shape index: {}]
  %s4 = inlined_call_operand.vmem [shape: f32[1,128], index: 4, kind: input, shape index: {}]
  %s5 = inlined_call_operand.vmem [shape: bf16[1,128,128], index: 5, kind: input, shape index: {}]
  %s6 = inlined_call_operand.vmem [shape: f32[1,1,128], index: 6, kind: input, shape index: {}]
  %s7 = inlined_call_operand.vmem [shape: bf16[2,128,128], index: 7, kind: input, shape index: {}]
  %s8 = inlined_call_operand.vmem [shape: f32[2,1,128], index: 8, kind: input, shape index: {}]
  %s9 = inlined_call_operand.vmem [shape: bf16[128,128], index: 9, kind: input, shape index: {}]
  %s10 = inlined_call_operand.vmem [shape: f32[1,128], index: 10, kind: input, shape index: {}]
  %s11 = inlined_call_operand.hbm [shape: f32[128,128], index: 11, kind: output, shape index: {}]
  %s12 = sld [smem:[#allocation0]]
  $region81: #{tpu_custom_call.1} parent=0
    _
  %s14 = ssub.s32 1, %s12
  %s15 = scalar_select 0, %s14, %s12
  $region1: #{tpu_custom_call.1} parent=0
    #allocation2 [shape = 'u8[262144]{0}', space=vmem, size = 0x40000, scoped, tag = 'input window, operand 1']
    #allocation3 [shape = 's32[2]{0}', space=sflag, size = 0x8, scoped, tag = 'scoped memory for tpu_custom_call.1']
    #allocation4 [shape = 's32[2]{0}', space=sflag, size = 0x8, scoped, tag = 'scoped memory for tpu_custom_call.1']
    #allocation5 [shape = 'u8[32768]{0}', space=vmem, size = 0x8000, scoped, tag = 'output window, operand 0']
    %16 = vsyncpa [#allocation3], 0
    %s17 = scalar_lea.sflag [#allocation3], 1
    %18 = vsyncpa %s17, 0
    %19 = vsyncpa [#allocation4], 0
    %s20 = scalar_lea.sflag [#allocation4], 1
    %21 = vsyncpa %s20, 0
    loop: start=0, step=1, limit=6
    $region2: #{tpu_custom_call.1} parent=1 // loop_pre_header
      _
    $region3: #{tpu_custom_call.1} parent=1 // loop_header
      %s23 = sphi 0, %s27
      %p24 = scmp.ge.s32.totalorder %s23, 6
      %s33 = sphi 0, %s35
      %s36 = sphi 0, %s33
      %s37 = sphi 0, %s36
      %s53 = sphi 0, %s37
      %s59 = sphi 0, %s61
      %s62 = sphi 0, %s59
      %s63 = sphi 0, %s62
      %s79 = sphi 0, %s63
      %s83 = sphi 0, %s83
      %s85 = sphi 0, %s83
      %s86 = sphi 0, %s85
      %s100 = sphi 0, %s86
      %s104 = sphi 0, %s104
      %s106 = sphi 0, %s104
      %s107 = sphi 0, %s106
      %s121 = sphi 0, %s107
      %s125 = sphi 0, %s125
      %s127 = sphi 0, %s125
      %s128 = sphi 0, %s127
      %s142 = sphi 0, %s128
      %s146 = sphi 0, %s146
      %s148 = sphi 0, %s146
      %s149 = sphi 0, %s148
      %s163 = sphi 0, %s149
      %s167 = sphi 0, %s167
      %s169 = sphi 0, %s167
      %s170 = sphi 0, %s169
      %s184 = sphi 0, %s170
      %s188 = sphi 0, %s188
      %s190 = sphi 0, %s188
      %s191 = sphi 0, %s190
      %s205 = sphi 0, %s191
      %s209 = sphi 0, %s209
      %s211 = sphi 0, %s209
      %s212 = sphi 0, %s211
      %s226 = sphi 0, %s212
      %s230 = sphi 0, %s230
      %s232 = sphi 0, %s230
      %s233 = sphi 0, %s232
      %s247 = sphi 0, %s233
      %s251 = sphi 0, %s251
      %s253 = sphi 0, %s251
      %s254 = sphi 0, %s253
      %s268 = sphi 0, %s254
      %s274 = sphi 0, %s276
      %s277 = sphi 0, %s274
      %s278 = sphi 0, %s277
      %s294 = sphi 0, %s278
    $region4: #{tpu_custom_call.1} parent=1 // loop_header_branch
      %26 = sbr.rel (%p24) target = $region8
    $region5: #{tpu_custom_call.1} parent=1 // loop_body
      %s28 = ssub.s32 %s23, 1
      %s29 = ssub.s32 %s23, 2
      %s30 = sadd.s32 %s23, 1
      %s31 = ssub.s32 %s23, %s30
      %p32 = scmp.eq.s32.totalorder %s31, 0
      %s34 = sadd.s32 %s33, 1
      %s35 = scalar_select %p32, %s33, %s34
      %p38 = pneg %p32
      %p39 = scmp.eq.s32.totalorder %s23, 3
      %p40 = por %p38, %p39
      %p41 = scmp.ne.s32.totalorder %s33, %s36
      %p42 = scmp.eq.s32.totalorder %s23, 0
      %p43 = por %p41, %p42
      %p44 = scmp.ne.s32.totalorder %s33, %s36
      %p45 = scmp.eq.s32.totalorder %s28, 3
      %p46 = por %p44, %p45
      %p47 = scmp.ne.s32.totalorder %s36, %s37
      %p48 = scmp.eq.s32.totalorder %s28, 0
      %p49 = por %p47, %p48
      %p50 = scmp.ne.s32.totalorder %s36, %s37
      %p51 = scmp.eq.s32.totalorder %s29, 3
      %p52 = por %p50, %p51
      %p54 = scmp.ne.s32.totalorder %s37, %s53
      %p55 = scmp.eq.s32.totalorder %s29, 0
      %p56 = por %p54, %p55
      %s57 = ssub.s32 %s23, %s30
      %p58 = scmp.eq.s32.totalorder %s57, 0
      %s60 = sadd.s32 %s59, 1
      %s61 = scalar_select %p58, %s59, %s60
      %p64 = pneg %p58
      %p65 = scmp.eq.s32.totalorder %s23, 3
      %p66 = por %p64, %p65
      %p67 = scmp.ne.s32.totalorder %s59, %s62
      %p68 = scmp.eq.s32.totalorder %s23, 0
      %p69 = por %p67, %p68
      %p70 = scmp.ne.s32.totalorder %s59, %s62
      %p71 = scmp.eq.s32.totalorder %s28, 3
      %p72 = por %p70, %p71
      %p73 = scmp.ne.s32.totalorder %s62, %s63
      %p74 = scmp.eq.s32.totalorder %s28, 0
      %p75 = por %p73, %p74
      %p76 = scmp.ne.s32.totalorder %s62, %s63
      %p77 = scmp.eq.s32.totalorder %s29, 3
      %p78 = por %p76, %p77
      %p80 = scmp.ne.s32.totalorder %s63, %s79
      %p81 = scmp.eq.s32.totalorder %s29, 0
      %p82 = por %p80, %p81
      %s84 = sadd.s32 %s83, 1
      %p87 = scmp.eq.s32.totalorder %s23, 3
      %p88 = scmp.ne.s32.totalorder %s83, %s85
      %p89 = scmp.eq.s32.totalorder %s23, 0
      %p90 = por %p88, %p89
      %p91 = scmp.ne.s32.totalorder %s83, %s85
      %p92 = scmp.eq.s32.totalorder %s28, 3
      %p93 = por %p91, %p92
      %p94 = scmp.ne.s32.totalorder %s85, %s86
      %p95 = scmp.eq.s32.totalorder %s28, 0
      %p96 = por %p94, %p95
      %p97 = scmp.ne.s32.totalorder %s85, %s86
      %p98 = scmp.eq.s32.totalorder %s29, 3
      %p99 = por %p97, %p98
      %p101 = scmp.ne.s32.totalorder %s86, %s100
      %p102 = scmp.eq.s32.totalorder %s29, 0
      %p103 = por %p101, %p102
      %s105 = sadd.s32 %s104, 1
      %p108 = scmp.eq.s32.totalorder %s23, 3
      %p109 = scmp.ne.s32.totalorder %s104, %s106
      %p110 = scmp.eq.s32.totalorder %s23, 0
      %p111 = por %p109, %p110
      %p112 = scmp.ne.s32.totalorder %s104, %s106
      %p113 = scmp.eq.s32.totalorder %s28, 3
      %p114 = por %p112, %p113
      %p115 = scmp.ne.s32.totalorder %s106, %s107
      %p116 = scmp.eq.s32.totalorder %s28, 0
      %p117 = por %p115, %p116
      %p118 = scmp.ne.s32.totalorder %s106, %s107
      %p119 = scmp.eq.s32.totalorder %s29, 3
      %p120 = por %p118, %p119
      %p122 = scmp.ne.s32.totalorder %s107, %s121
      %p123 = scmp.eq.s32.totalorder %s29, 0
      %p124 = por %p122, %p123
      %s126 = sadd.s32 %s125, 1
      %p129 = scmp.eq.s32.totalorder %s23, 3
      %p130 = scmp.ne.s32.totalorder %s125, %s127
      %p131 = scmp.eq.s32.totalorder %s23, 0
      %p132 = por %p130, %p131
      %p133 = scmp.ne.s32.totalorder %s125, %s127
      %p134 = scmp.eq.s32.totalorder %s28, 3
      %p135 = por %p133, %p134
      %p136 = scmp.ne.s32.totalorder %s127, %s128
      %p137 = scmp.eq.s32.totalorder %s28, 0
      %p138 = por %p136, %p137
      %p139 = scmp.ne.s32.totalorder %s127, %s128
      %p140 = scmp.eq.s32.totalorder %s29, 3
      %p141 = por %p139, %p140
      %p143 = scmp.ne.s32.totalorder %s128, %s142
      %p144 = scmp.eq.s32.totalorder %s29, 0
      %p145 = por %p143, %p144
      %s147 = sadd.s32 %s146, 1
      %p150 = scmp.eq.s32.totalorder %s23, 3
      %p151 = scmp.ne.s32.totalorder %s146, %s148
      %p152 = scmp.eq.s32.totalorder %s23, 0
      %p153 = por %p151, %p152
      %p154 = scmp.ne.s32.totalorder %s146, %s148
      %p155 = scmp.eq.s32.totalorder %s28, 3
      %p156 = por %p154, %p155
      %p157 = scmp.ne.s32.totalorder %s148, %s149
      %p158 = scmp.eq.s32.totalorder %s28, 0
      %p159 = por %p157, %p158
      %p160 = scmp.ne.s32.totalorder %s148, %s149
      %p161 = scmp.eq.s32.totalorder %s29, 3
      %p162 = por %p160, %p161
      %p164 = scmp.ne.s32.totalorder %s149, %s163
      %p165 = scmp.eq.s32.totalorder %s29, 0
      %p166 = por %p164, %p165
      %s168 = sadd.s32 %s167, 1
      %p171 = scmp.eq.s32.totalorder %s23, 3
      %p172 = scmp.ne.s32.totalorder %s167, %s169
      %p173 = scmp.eq.s32.totalorder %s23, 0
      %p174 = por %p172, %p173
      %p175 = scmp.ne.s32.totalorder %s167, %s169
      %p176 = scmp.eq.s32.totalorder %s28, 3
      %p177 = por %p175, %p176
      %p178 = scmp.ne.s32.totalorder %s169, %s170
      %p179 = scmp.eq.s32.totalorder %s28, 0
      %p180 = por %p178, %p179
      %p181 = scmp.ne.s32.totalorder %s169, %s170
      %p182 = scmp.eq.s32.totalorder %s29, 3
      %p183 = por %p181, %p182
      %p185 = scmp.ne.s32.totalorder %s170, %s184
      %p186 = scmp.eq.s32.totalorder %s29, 0
      %p187 = por %p185, %p186
      %s189 = sadd.s32 %s188, 1
      %p192 = scmp.eq.s32.totalorder %s23, 3
      %p193 = scmp.ne.s32.totalorder %s188, %s190
      %p194 = scmp.eq.s32.totalorder %s23, 0
      %p195 = por %p193, %p194
      %p196 = scmp.ne.s32.totalorder %s188, %s190
      %p197 = scmp.eq.s32.totalorder %s28, 3
      %p198 = por %p196, %p197
      %p199 = scmp.ne.s32.totalorder %s190, %s191
      %p200 = scmp.eq.s32.totalorder %s28, 0
      %p201 = por %p199, %p200
      %p202 = scmp.ne.s32.totalorder %s190, %s191
      %p203 = scmp.eq.s32.totalorder %s29, 3
      %p204 = por %p202, %p203
      %p206 = scmp.ne.s32.totalorder %s191, %s205
      %p207 = scmp.eq.s32.totalorder %s29, 0
      %p208 = por %p206, %p207
      %s210 = sadd.s32 %s209, 1
      %p213 = scmp.eq.s32.totalorder %s23, 3
      %p214 = scmp.ne.s32.totalorder %s209, %s211
      %p215 = scmp.eq.s32.totalorder %s23, 0
      %p216 = por %p214, %p215
      %p217 = scmp.ne.s32.totalorder %s209, %s211
      %p218 = scmp.eq.s32.totalorder %s28, 3
      %p219 = por %p217, %p218
      %p220 = scmp.ne.s32.totalorder %s211, %s212
      %p221 = scmp.eq.s32.totalorder %s28, 0
      %p222 = por %p220, %p221
      %p223 = scmp.ne.s32.totalorder %s211, %s212
      %p224 = scmp.eq.s32.totalorder %s29, 3
      %p225 = por %p223, %p224
      %p227 = scmp.ne.s32.totalorder %s212, %s226
      %p228 = scmp.eq.s32.totalorder %s29, 0
      %p229 = por %p227, %p228
      %s231 = sadd.s32 %s230, 1
      %p234 = scmp.eq.s32.totalorder %s23, 3
      %p235 = scmp.ne.s32.totalorder %s230, %s232
      %p236 = scmp.eq.s32.totalorder %s23, 0
      %p237 = por %p235, %p236
      %p238 = scmp.ne.s32.totalorder %s230, %s232
      %p239 = scmp.eq.s32.totalorder %s28, 3
      %p240 = por %p238, %p239
      %p241 = scmp.ne.s32.totalorder %s232, %s233
      %p242 = scmp.eq.s32.totalorder %s28, 0
      %p243 = por %p241, %p242
      %p244 = scmp.ne.s32.totalorder %s232, %s233
      %p245 = scmp.eq.s32.totalorder %s29, 3
      %p246 = por %p244, %p245
      %p248 = scmp.ne.s32.totalorder %s233, %s247
      %p249 = scmp.eq.s32.totalorder %s29, 0
      %p250 = por %p248, %p249
      %s252 = sadd.s32 %s251, 1
      %p255 = scmp.eq.s32.totalorder %s23, 3
      %p256 = scmp.ne.s32.totalorder %s251, %s253
      %p257 = scmp.eq.s32.totalorder %s23, 0
      %p258 = por %p256, %p257
      %p259 = scmp.ne.s32.totalorder %s251, %s253
      %p260 = scmp.eq.s32.totalorder %s28, 3
      %p261 = por %p259, %p260
      %p262 = scmp.ne.s32.totalorder %s253, %s254
      %p263 = scmp.eq.s32.totalorder %s28, 0
      %p264 = por %p262, %p263
      %p265 = scmp.ne.s32.totalorder %s253, %s254
      %p266 = scmp.eq.s32.totalorder %s29, 3
      %p267 = por %p265, %p266
      %p269 = scmp.ne.s32.totalorder %s254, %s268
      %p270 = scmp.eq.s32.totalorder %s29, 0
      %p271 = por %p269, %p270
      %s272 = ssub.s32 %s23, %s30
      %p273 = scmp.eq.s32.totalorder %s272, 0
      %s275 = sadd.s32 %s274, 1
      %s276 = scalar_select %p273, %s274, %s275
      %p279 = pneg %p273
      %p280 = scmp.eq.s32.totalorder %s23, 3
      %p281 = por %p279, %p280
      %p282 = scmp.ne.s32.totalorder %s274, %s277
      %p283 = scmp.eq.s32.totalorder %s23, 0
      %p284 = por %p282, %p283
      %p285 = scmp.ne.s32.totalorder %s274, %s277
      %p286 = scmp.eq.s32.totalorder %s28, 3
      %p287 = por %p285, %p286
      %p288 = scmp.ne.s32.totalorder %s277, %s278
      %p289 = scmp.eq.s32.totalorder %s28, 0
      %p290 = por %p288, %p289
      %p291 = scmp.ne.s32.totalorder %s277, %s278
      %p292 = scmp.eq.s32.totalorder %s29, 3
      %p293 = por %p291, %p292
      %p295 = scmp.ne.s32.totalorder %s278, %s294
      %p296 = scmp.eq.s32.totalorder %s29, 0
      %p297 = por %p295, %p296
      %p298 = scmp.le.s32.totalorder 1, %s23
      %p299 = scmp.lt.s32.totalorder %s23, 5
      %p300 = pnand %p298, %p299
      %p301 = pneg %p300
      // Predicated region
      $region9: #{tpu_custom_call.1} parent=5 // pred_check
        _
      $region10: #{tpu_custom_call.1} parent=5 // pred_check_branch
        %303 = sbr.rel (%p300) target = $region12
      $region11: #{tpu_custom_call.1} parent=5 // pred_region
        %s304 = ssub.s32 %s23, 1
        // Predicated region
        $region13: #{tpu_custom_call.1} parent=11 // pred_check
          %p305 = pneg %p96
        $region14: #{tpu_custom_call.1} parent=11 // pred_check_branch
          %307 = sbr.rel (%p305) target = $region16
        $region15: #{tpu_custom_call.1} parent=11 // pred_region
          _
        $region16: #{tpu_custom_call.1} parent=11 // pred_fallthru
          _
        // Predicated region
        $region17: #{tpu_custom_call.1} parent=11 // pred_check
          %p308 = pneg %p117
        $region18: #{tpu_custom_call.1} parent=11 // pred_check_branch
          %310 = sbr.rel (%p308) target = $region20
        $region19: #{tpu_custom_call.1} parent=11 // pred_region
          _
        $region20: #{tpu_custom_call.1} parent=11 // pred_fallthru
          _
        // Predicated region
        $region21: #{tpu_custom_call.1} parent=11 // pred_check
          %p311 = pneg %p138
        $region22: #{tpu_custom_call.1} parent=11 // pred_check_branch
          %313 = sbr.rel (%p311) target = $region24
        $region23: #{tpu_custom_call.1} parent=11 // pred_region
          _
        $region24: #{tpu_custom_call.1} parent=11 // pred_fallthru
          _
        // Predicated region
        $region25: #{tpu_custom_call.1} parent=11 // pred_check
          %p314 = pneg %p159
        $region26: #{tpu_custom_call.1} parent=11 // pred_check_branch
          %316 = sbr.rel (%p314) target = $region28
        $region27: #{tpu_custom_call.1} parent=11 // pred_region
          _
        $region28: #{tpu_custom_call.1} parent=11 // pred_fallthru
          _
        // Predicated region
        $region29: #{tpu_custom_call.1} parent=11 // pred_check
          %p317 = pneg %p180
        $region30: #{tpu_custom_call.1} parent=11 // pred_check_branch
          %319 = sbr.rel (%p317) target = $region32
        $region31: #{tpu_custom_call.1} parent=11 // pred_region
          _
        $region32: #{tpu_custom_call.1} parent=11 // pred_fallthru
          _
        // Predicated region
        $region33: #{tpu_custom_call.1} parent=11 // pred_check
          %p320 = pneg %p201
        $region34: #{tpu_custom_call.1} parent=11 // pred_check_branch
          %322 = sbr.rel (%p320) target = $region36
        $region35: #{tpu_custom_call.1} parent=11 // pred_region
          _
        $region36: #{tpu_custom_call.1} parent=11 // pred_fallthru
          _
        // Predicated region
        $region37: #{tpu_custom_call.1} parent=11 // pred_check
          %p323 = pneg %p222
        $region38: #{tpu_custom_call.1} parent=11 // pred_check_branch
          %325 = sbr.rel (%p323) target = $region40
        $region39: #{tpu_custom_call.1} parent=11 // pred_region
          _
        $region40: #{tpu_custom_call.1} parent=11 // pred_fallthru
          _
        // Predicated region
        $region41: #{tpu_custom_call.1} parent=11 // pred_check
          %p326 = pneg %p243
        $region42: #{tpu_custom_call.1} parent=11 // pred_check_branch
          %328 = sbr.rel (%p326) target = $region44
        $region43: #{tpu_custom_call.1} parent=11 // pred_region
          _
        $region44: #{tpu_custom_call.1} parent=11 // pred_fallthru
          _
        // Predicated region
        $region45: #{tpu_custom_call.1} parent=11 // pred_check
          %p329 = pneg %p264
        $region46: #{tpu_custom_call.1} parent=11 // pred_check_branch
          %331 = sbr.rel (%p329) target = $region48
        $region47: #{tpu_custom_call.1} parent=11 // pred_region
          _
        $region48: #{tpu_custom_call.1} parent=11 // pred_fallthru
          _
      $region12: #{tpu_custom_call.1} parent=5 // pred_fallthru
        _
      %p332 = scmp.lt.s32.totalorder %s23, 4
      // Predicated region
      $region49: #{tpu_custom_call.1} parent=5 // pred_check
        %p333 = pneg %p332
      $region50: #{tpu_custom_call.1} parent=5 // pred_check_branch
        %335 = sbr.rel (%p333) target = $region52
      $region51: #{tpu_custom_call.1} parent=5 // pred_region
        // Predicated region
        $region53: #{tpu_custom_call.1} parent=51 // pred_check
          %p336 = pneg %p43
        $region54: #{tpu_custom_call.1} parent=51 // pred_check_branch
          %338 = sbr.rel (%p336) target = $region56
        $region55: #{tpu_custom_call.1} parent=51 // pred_region
          %s339 = smul.u32 32, %s23
          %p340 = scmp.lt.s32.totalorder %s339, 127
          %s341 = scalar_select %p340, %s339, 127
          %s342 = smul.addr %s341, 4
          %s343 = scalar_lea.vmem %s0, %s342
          %s344 = smul.u32 32, %s23
        $region56: #{tpu_custom_call.1} parent=51 // pred_fallthru
          _
        // Predicated region
        $region57: #{tpu_custom_call.1} parent=51 // pred_check
          %p345 = pneg %p69
        $region58: #{tpu_custom_call.1} parent=51 // pred_check_branch
          %347 = sbr.rel (%p345) target = $region60
        $region59: #{tpu_custom_call.1} parent=51 // pred_region
          %s348 = sand.u32 %s59, 1
          %s349 = scalar_lea.sflag [#allocation3], %s348
          %s350 = sand.u32 %s59, 1
          %s351 = smul.addr %s350, 256
          %s352 = scalar_lea.vmem [#allocation2], %s351
          %s354 = ssub.s32 4096, 4096
          %355 = vsyncadd %s349, %s354
          %s356 = smul.addr %s23, 64
          %s357 = smul.addr %s356, 64
          %s358 = scalar_lea.hbm %s1, %s357
          %s359 = sshll.u32 %s352, 4
          %s360 = int_to_ptr.vmem [resolvable:$true] %s359
          %365 = dma.hbm_to_vmem [thread:$0]  %s358, 4096, %s360, %s349, 128, 128, 8
        $region60: #{tpu_custom_call.1} parent=51 // pred_fallthru
          _
      $region52: #{tpu_custom_call.1} parent=5 // pred_fallthru
        _
      %p366 = scmp.le.s32.totalorder 1, %s23
      %p367 = scmp.lt.s32.totalorder %s23, 5
      %p368 = pnand %p366, %p367
      %p369 = pneg %p368
      // Predicated region
      $region61: #{tpu_custom_call.1} parent=5 // pred_check
        _
      $region62: #{tpu_custom_call.1} parent=5 // pred_check_branch
        %371 = sbr.rel (%p368) target = $region64
      $region63: #{tpu_custom_call.1} parent=5 // pred_region
        %s372 = ssub.s32 %s23, 1
        %s373 = sand.u32 %s62, 1
        %s374 = scalar_lea.sflag [#allocation3], %s373
        %s375 = sand.u32 %s62, 1
        %s376 = smul.addr %s375, 256
        %s377 = scalar_lea.vmem [#allocation2], %s376
        // Predicated region
        $region65: #{tpu_custom_call.1} parent=63 // pred_check
          %p378 = pneg %p75
        $region66: #{tpu_custom_call.1} parent=63 // pred_check_branch
          %380 = sbr.rel (%p378) target = $region68
        $region67: #{tpu_custom_call.1} parent=63 // pred_region
          %381 = dma.done %s374, 4096
        $region68: #{tpu_custom_call.1} parent=63 // pred_fallthru
          _
        %s382 = smul.u32 32, %s28
        %p383 = scmp.lt.s32.totalorder %s382, 127
        %s384 = scalar_select %p383, %s382, 127
        %s385 = smul.addr %s384, 4
        %s386 = scalar_lea.vmem %s0, %s385
        %p387 = pneg %p49
        %p388 = pneg %p46
        %s389 = sand.u32 %s62, 1
        %s390 = scalar_lea.sflag [#allocation3], %s389
        %s391 = sand.u32 %s62, 1
        %s392 = smul.addr %s391, 256
        %s393 = scalar_lea.vmem [#allocation2], %s392
        %p394 = pneg %p75
        %p395 = pneg %p72
        %p396 = pneg %p96
        %p397 = pneg %p93
        %p398 = pneg %p117
        %p399 = pneg %p114
        %p400 = pneg %p138
        %p401 = pneg %p135
        %p402 = pneg %p159
        %p403 = pneg %p156
        %p404 = pneg %p180
        %p405 = pneg %p177
        %p406 = pneg %p201
        %p407 = pneg %p198
        %p408 = pneg %p222
        %p409 = pneg %p219
        %p410 = pneg %p243
        %p411 = pneg %p240
        %p412 = pneg %p264
        %p413 = pneg %p261
        %p414 = pneg %p290
        %p415 = pneg %p287
        %s416 = sand.u32 %s277, 1
        %s417 = scalar_lea.sflag [#allocation4], %s416
        %s418 = sand.u32 %s277, 1
        %s419 = smul.addr %s418, 32
        %s420 = scalar_lea.vmem [#allocation5], %s419
        %s421 = smul.u32 32, %s28
        %p422 = scmp.lt.s32.totalorder %s421, 127
        %s423 = scalar_select %p422, %s421, 127
        %s424 = smul.addr %s423, 4
        %s425 = scalar_lea.vmem %s0, %s424
        %s426 = smul.u32 32, %s28
        %s427 = smul.u32 4, %s28
        %v429 = vld [vmem:[%s377] sm:$0xff]
        %v430 = vld [vmem:[%s377 + $0x8] sm:$0xff]
        %v431 = vld [vmem:[%s377 + $0x10] sm:$0xff]
        %v432 = vld [vmem:[%s377 + $0x18] sm:$0xff]
        %v433 = vld [vmem:[%s377 + $0x20] sm:$0xff]
        %v434 = vld [vmem:[%s377 + $0x28] sm:$0xff]
        %v435 = vld [vmem:[%s377 + $0x30] sm:$0xff]
        %v436 = vld [vmem:[%s377 + $0x38] sm:$0xff]
        %v437 = vld [vmem:[%s377 + $0x40] sm:$0xff]
        %v438 = vld [vmem:[%s377 + $0x48] sm:$0xff]
        %v439 = vld [vmem:[%s377 + $0x50] sm:$0xff]
        %v440 = vld [vmem:[%s377 + $0x58] sm:$0xff]
        %v441 = vld [vmem:[%s377 + $0x60] sm:$0xff]
        %v442 = vld [vmem:[%s377 + $0x68] sm:$0xff]
        %v443 = vld [vmem:[%s377 + $0x70] sm:$0xff]
        %v444 = vld [vmem:[%s377 + $0x78] sm:$0xff]
        %v445 = vld [vmem:[%s377 + $0x80] sm:$0xff]
        %v446 = vld [vmem:[%s377 + $0x88] sm:$0xff]
        %v447 = vld [vmem:[%s377 + $0x90] sm:$0xff]
        %v448 = vld [vmem:[%s377 + $0x98] sm:$0xff]
        %v449 = vld [vmem:[%s377 + $0xa0] sm:$0xff]
        %v450 = vld [vmem:[%s377 + $0xa8] sm:$0xff]
        %v451 = vld [vmem:[%s377 + $0xb0] sm:$0xff]
        %v452 = vld [vmem:[%s377 + $0xb8] sm:$0xff]
        %v453 = vld [vmem:[%s377 + $0xc0] sm:$0xff]
        %v454 = vld [vmem:[%s377 + $0xc8] sm:$0xff]
        %v455 = vld [vmem:[%s377 + $0xd0] sm:$0xff]
        %v456 = vld [vmem:[%s377 + $0xd8] sm:$0xff]
        %v457 = vld [vmem:[%s377 + $0xe0] sm:$0xff]
        %v458 = vld [vmem:[%s377 + $0xe8] sm:$0xff]
        %v459 = vld [vmem:[%s377 + $0xf0] sm:$0xff]
        %v460 = vld [vmem:[%s377 + $0xf8] sm:$0xff]
        %v461 = vld [vmem:[%s425] sm:$0xf]
        %v462 = vld [vmem:[%s425 + $0x4] sm:$0xf]
        %v463 = vld [vmem:[%s425 + $0x8] sm:$0xf]
        %v464 = vld [vmem:[%s425 + $0xc] sm:$0xf]
        %v465 = vld [vmem:[%s425 + $0x10] sm:$0xf]
        %v466 = vld [vmem:[%s425 + $0x14] sm:$0xf]
        %v467 = vld [vmem:[%s425 + $0x18] sm:$0xf]
        %v468 = vld [vmem:[%s425 + $0x1c] sm:$0xf]
        %v469 = vld [vmem:[%s425 + $0x20] sm:$0xf]
        %v470 = vld [vmem:[%s425 + $0x24] sm:$0xf]
        %v471 = vld [vmem:[%s425 + $0x28] sm:$0xf]
        %v472 = vld [vmem:[%s425 + $0x2c] sm:$0xf]
        %v473 = vld [vmem:[%s425 + $0x30] sm:$0xf]
        %v474 = vld [vmem:[%s425 + $0x34] sm:$0xf]
        %v475 = vld [vmem:[%s425 + $0x38] sm:$0xf]
        %v476 = vld [vmem:[%s425 + $0x3c] sm:$0xf]
        %v477 = vld [vmem:[%s425 + $0x40] sm:$0xf]
        %v478 = vld [vmem:[%s425 + $0x44] sm:$0xf]
        %v479 = vld [vmem:[%s425 + $0x48] sm:$0xf]
        %v480 = vld [vmem:[%s425 + $0x4c] sm:$0xf]
        %v481 = vld [vmem:[%s425 + $0x50] sm:$0xf]
        %v482 = vld [vmem:[%s425 + $0x54] sm:$0xf]
        %v483 = vld [vmem:[%s425 + $0x58] sm:$0xf]
        %v484 = vld [vmem:[%s425 + $0x5c] sm:$0xf]
        %v485 = vld [vmem:[%s425 + $0x60] sm:$0xf]
        %v486 = vld [vmem:[%s425 + $0x64] sm:$0xf]
        %v487 = vld [vmem:[%s425 + $0x68] sm:$0xf]
        %v488 = vld [vmem:[%s425 + $0x6c] sm:$0xf]
        %v489 = vld [vmem:[%s425 + $0x70] sm:$0xf]
        %v490 = vld [vmem:[%s425 + $0x74] sm:$0xf]
        %v491 = vld [vmem:[%s425 + $0x78] sm:$0xf]
        %v492 = vld [vmem:[%s425 + $0x7c] sm:$0xf]
        %v525 = vunpack.c.l.b16 %v429
        %v526 = vunpack.c.h.b16 %v429
        %v527 = vunpack.c.l.b16 %v430
        %v528 = vunpack.c.h.b16 %v430
        %v529 = vunpack.c.l.b16 %v431
        %v530 = vunpack.c.h.b16 %v431
        %v531 = vunpack.c.l.b16 %v432
        %v532 = vunpack.c.h.b16 %v432
        %v533 = vunpack.c.l.b16 %v433
        %v534 = vunpack.c.h.b16 %v433
        %v535 = vunpack.c.l.b16 %v434
        %v536 = vunpack.c.h.b16 %v434
        %v537 = vunpack.c.l.b16 %v435
        %v538 = vunpack.c.h.b16 %v435
        %v539 = vunpack.c.l.b16 %v436
        %v540 = vunpack.c.h.b16 %v436
        %v541 = vunpack.c.l.b16 %v437
        %v542 = vunpack.c.h.b16 %v437
        %v543 = vunpack.c.l.b16 %v438
        %v544 = vunpack.c.h.b16 %v438
        %v545 = vunpack.c.l.b16 %v439
        %v546 = vunpack.c.h.b16 %v439
        %v547 = vunpack.c.l.b16 %v440
        %v548 = vunpack.c.h.b16 %v440
        %v549 = vunpack.c.l.b16 %v441
        %v550 = vunpack.c.h.b16 %v441
        %v551 = vunpack.c.l.b16 %v442
        %v552 = vunpack.c.h.b16 %v442
        %v553 = vunpack.c.l.b16 %v443
        %v554 = vunpack.c.h.b16 %v443
        %v555 = vunpack.c.l.b16 %v444
        %v556 = vunpack.c.h.b16 %v444
        %v557 = vunpack.c.l.b16 %v445
        %v558 = vunpack.c.h.b16 %v445
        %v559 = vunpack.c.l.b16 %v446
        %v560 = vunpack.c.h.b16 %v446
        %v561 = vunpack.c.l.b16 %v447
        %v562 = vunpack.c.h.b16 %v447
        %v563 = vunpack.c.l.b16 %v448
        %v564 = vunpack.c.h.b16 %v448
        %v565 = vunpack.c.l.b16 %v449
        %v566 = vunpack.c.h.b16 %v449
        %v567 = vunpack.c.l.b16 %v450
        %v568 = vunpack.c.h.b16 %v450
        %v569 = vunpack.c.l.b16 %v451
        %v570 = vunpack.c.h.b16 %v451
        %v571 = vunpack.c.l.b16 %v452
        %v572 = vunpack.c.h.b16 %v452
        %v573 = vunpack.c.l.b16 %v453
        %v574 = vunpack.c.h.b16 %v453
        %v575 = vunpack.c.l.b16 %v454
        %v576 = vunpack.c.h.b16 %v454
        %v577 = vunpack.c.l.b16 %v455
        %v578 = vunpack.c.h.b16 %v455
        %v579 = vunpack.c.l.b16 %v456
        %v580 = vunpack.c.h.b16 %v456
        %v581 = vunpack.c.l.b16 %v457
        %v582 = vunpack.c.h.b16 %v457
        %v583 = vunpack.c.l.b16 %v458
        %v584 = vunpack.c.h.b16 %v458
        %v585 = vunpack.c.l.b16 %v459
        %v586 = vunpack.c.h.b16 %v459
        %v587 = vunpack.c.l.b16 %v460
        %v588 = vunpack.c.h.b16 %v460
        %v589 = vpack.c.b16 %v527, %v525
        %v590 = vpack.c.b16 %v528, %v526
        %v591 = vpack.c.b16 %v531, %v529
        %v592 = vpack.c.b16 %v532, %v530
        %v593 = vpack.c.b16 %v535, %v533
        %v594 = vpack.c.b16 %v536, %v534
        %v595 = vpack.c.b16 %v539, %v537
        %v596 = vpack.c.b16 %v540, %v538
        %v597 = vpack.c.b16 %v543, %v541
        %v598 = vpack.c.b16 %v544, %v542
        %v599 = vpack.c.b16 %v547, %v545
        %v600 = vpack.c.b16 %v548, %v546
        %v601 = vpack.c.b16 %v551, %v549
        %v602 = vpack.c.b16 %v552, %v550
        %v603 = vpack.c.b16 %v555, %v553
        %v604 = vpack.c.b16 %v556, %v554
        %v605 = vpack.c.b16 %v559, %v557
        %v606 = vpack.c.b16 %v560, %v558
        %v607 = vpack.c.b16 %v563, %v561
        %v608 = vpack.c.b16 %v564, %v562
        %v609 = vpack.c.b16 %v567, %v565
        %v610 = vpack.c.b16 %v568, %v566
        %v611 = vpack.c.b16 %v571, %v569
        %v612 = vpack.c.b16 %v572, %v570
        %v613 = vpack.c.b16 %v575, %v573
        %v614 = vpack.c.b16 %v576, %v574
        %v615 = vpack.c.b16 %v579, %v577
        %v616 = vpack.c.b16 %v580, %v578
        %v617 = vpack.c.b16 %v583, %v581
        %v618 = vpack.c.b16 %v584, %v582
        %v619 = vpack.c.b16 %v587, %v585
        %v620 = vpack.c.b16 %v588, %v586
        %v685 = vunpack.c.l.b16 %v461
        %v686 = vunpack.c.l.b16 %v462
        %v687 = vunpack.c.l.b16 %v463
        %v688 = vunpack.c.l.b16 %v464
        %v689 = vunpack.c.l.b16 %v465
        %v690 = vunpack.c.l.b16 %v466
        %v691 = vunpack.c.l.b16 %v467
        %v692 = vunpack.c.l.b16 %v468
        %v693 = vunpack.c.l.b16 %v469
        %v694 = vunpack.c.l.b16 %v470
        %v695 = vunpack.c.l.b16 %v471
        %v696 = vunpack.c.l.b16 %v472
        %v697 = vunpack.c.l.b16 %v473
        %v698 = vunpack.c.l.b16 %v474
        %v699 = vunpack.c.l.b16 %v475
        %v700 = vunpack.c.l.b16 %v476
        %v701 = vunpack.c.l.b16 %v477
        %v702 = vunpack.c.l.b16 %v478
        %v703 = vunpack.c.l.b16 %v479
        %v704 = vunpack.c.l.b16 %v480
        %v705 = vunpack.c.l.b16 %v481
        %v706 = vunpack.c.l.b16 %v482
        %v707 = vunpack.c.l.b16 %v483
        %v708 = vunpack.c.l.b16 %v484
        %v709 = vunpack.c.l.b16 %v485
        %v710 = vunpack.c.l.b16 %v486
        %v711 = vunpack.c.l.b16 %v487
        %v712 = vunpack.c.l.b16 %v488
        %v713 = vunpack.c.l.b16 %v489
        %v714 = vunpack.c.l.b16 %v490
        %v715 = vunpack.c.l.b16 %v491
        %v716 = vunpack.c.l.b16 %v492
        %v717 = vpack.c.b16 %v686, %v685
        %v718 = vpack.c.b16 %v688, %v687
        %v719 = vpack.c.b16 %v690, %v689
        %v720 = vpack.c.b16 %v692, %v691
        %v721 = vpack.c.b16 %v694, %v693
        %v722 = vpack.c.b16 %v696, %v695
        %v723 = vpack.c.b16 %v698, %v697
        %v724 = vpack.c.b16 %v700, %v699
        %v725 = vpack.c.b16 %v702, %v701
        %v726 = vpack.c.b16 %v704, %v703
        %v727 = vpack.c.b16 %v706, %v705
        %v728 = vpack.c.b16 %v708, %v707
        %v729 = vpack.c.b16 %v710, %v709
        %v730 = vpack.c.b16 %v712, %v711
        %v731 = vpack.c.b16 %v714, %v713
        %v732 = vpack.c.b16 %v716, %v715
        %749 = vmatprep.subr.bf16.mxu0 0
        %750 = vmatpush1.bf16.msra.mxu0 %v717
        %751 = vmatprep.subr.bf16.mxu0 0
        %752 = vmatpush1.bf16.msra.mxu0 %v718
        %753 = vmatprep.subr.bf16.mxu0 0
        %754 = vmatpush1.bf16.msra.mxu0 %v719
        %755 = vmatprep.subr.bf16.mxu0 0
        %756 = vmatpush1.bf16.msra.mxu0 %v720
        %757 = vmatprep.subr.bf16.mxu0 0
        %758 = vmatpush1.bf16.msra.mxu0 %v721
        %759 = vmatprep.subr.bf16.mxu0 0
        %760 = vmatpush1.bf16.msra.mxu0 %v722
        %761 = vmatprep.subr.bf16.mxu0 0
        %762 = vmatpush1.bf16.msra.mxu0 %v723
        %763 = vmatprep.subr.bf16.mxu0 0
        %764 = vmatpush1.bf16.msra.mxu0 %v724
        %765 = vmatprep.subr.bf16.mxu0 0
        %766 = vmatpush1.bf16.msra.mxu0 %v725
        %767 = vmatprep.subr.bf16.mxu0 0
        %768 = vmatpush1.bf16.msra.mxu0 %v726
        %769 = vmatprep.subr.bf16.mxu0 0
        %770 = vmatpush1.bf16.msra.mxu0 %v727
        %771 = vmatprep.subr.bf16.mxu0 0
        %772 = vmatpush1.bf16.msra.mxu0 %v728
        %773 = vmatprep.subr.bf16.mxu0 0
        %774 = vmatpush1.bf16.msra.mxu0 %v729
        %775 = vmatprep.subr.bf16.mxu0 0
        %776 = vmatpush1.bf16.msra.mxu0 %v730
        %777 = vmatprep.subr.bf16.mxu0 0
        %778 = vmatpush1.bf16.msra.mxu0 %v731
        %779 = vmatprep.subr.bf16.mxu0 0
        %780 = vmatpush1.bf16.msra.mxu0 %v732
        %781 = vmatprep.mubr.bf16.mxu0 %v590
        %782 = vmatmul.mubr.bf16.gmra.mrb[0].mxu0 %v589
        %v783 = vpop.f32.mrb[0].mxu0
        %v784 = vadd.f32 0.0, %v783
        %v785 = vpop.f32.mrb[0].mxu0
        %v786 = vpop.f32.mrb[0].mxu0
        %v787 = vadd.f32 0.0, %v786
        %v788 = vpop.f32.mrb[0].mxu0
        %789 = vmatprep.mubr.bf16.mxu0 %v592
        %790 = vmatmul.mubr.bf16.gmra.mrb[0].mxu0 %v591
        %v791 = vpop.f32.mrb[0].mxu0
        %v792 = vadd.f32 0.0, %v791
        %v793 = vpop.f32.mrb[0].mxu0
        %v794 = vpop.f32.mrb[0].mxu0
        %v795 = vadd.f32 0.0, %v794
        %v796 = vpop.f32.mrb[0].mxu0
        %797 = vmatprep.mubr.bf16.mxu0 %v594
        %798 = vmatmul.mubr.bf16.gmra.mrb[0].mxu0 %v593
        %v799 = vpop.f32.mrb[0].mxu0
        %v800 = vadd.f32 0.0, %v799
        %v801 = vpop.f32.mrb[0].mxu0
        %v802 = vpop.f32.mrb[0].mxu0
        %v803 = vadd.f32 0.0, %v802
        %v804 = vpop.f32.mrb[0].mxu0
        %805 = vmatprep.mubr.bf16.mxu0 %v596
        %806 = vmatmul.mubr.bf16.gmra.mrb[0].mxu0 %v595
        %v807 = vpop.f32.mrb[0].mxu0
        %v808 = vadd.f32 0.0, %v807
        %v809 = vpop.f32.mrb[0].mxu0
        %v810 = vpop.f32.mrb[0].mxu0
        %v811 = vadd.f32 0.0, %v810
        %v812 = vpop.f32.mrb[0].mxu0
        %813 = vmatprep.mubr.bf16.mxu0 %v598
        %814 = vmatmul.mubr.bf16.gmra.mrb[0].mxu0 %v597
        %v815 = vpop.f32.mrb[0].mxu0
        %v816 = vadd.f32 0.0, %v815
        %v817 = vpop.f32.mrb[0].mxu0
        %v818 = vpop.f32.mrb[0].mxu0
        %v819 = vadd.f32 0.0, %v818
        %v820 = vpop.f32.mrb[0].mxu0
        %821 = vmatprep.mubr.bf16.mxu0 %v600
        %822 = vmatmul.mubr.bf16.gmra.mrb[0].mxu0 %v599
        %v823 = vpop.f32.mrb[0].mxu0
        %v824 = vadd.f32 0.0, %v823
        %v825 = vpop.f32.mrb[0].mxu0
        %v826 = vpop.f32.mrb[0].mxu0
        %v827 = vadd.f32 0.0, %v826
        %v828 = vpop.f32.mrb[0].mxu0
        %829 = vmatprep.mubr.bf16.mxu0 %v602
        %830 = vmatmul.mubr.bf16.gmra.mrb[0].mxu0 %v601
        %v831 = vpop.f32.mrb[0].mxu0
        %v832 = vadd.f32 0.0, %v831
        %v833 = vpop.f32.mrb[0].mxu0
        %v834 = vpop.f32.mrb[0].mxu0
        %v835 = vadd.f32 0.0, %v834
        %v836 = vpop.f32.mrb[0].mxu0
        %837 = vmatprep.mubr.bf16.mxu0 %v604
        %838 = vmatmul.mubr.bf16.gmra.mrb[0].mxu0 %v603
        %v839 = vpop.f32.mrb[0].mxu0
        %v840 = vadd.f32 0.0, %v839
        %v841 = vpop.f32.mrb[0].mxu0
        %v842 = vpop.f32.mrb[0].mxu0
        %v843 = vadd.f32 0.0, %v842
        %v844 = vpop.f32.mrb[0].mxu0
        %845 = vmatprep.mubr.bf16.mxu0 %v606
        %846 = vmatmul.mubr.bf16.gmra.mrb[0].mxu0 %v605
        %v847 = vpop.f32.mrb[0].mxu0
        %v848 = vadd.f32 0.0, %v847
        %v849 = vpop.f32.mrb[0].mxu0
        %v850 = vpop.f32.mrb[0].mxu0
        %v851 = vadd.f32 0.0, %v850
        %v852 = vpop.f32.mrb[0].mxu0
        %853 = vmatprep.mubr.bf16.mxu0 %v608
        %854 = vmatmul.mubr.bf16.gmra.mrb[0].mxu0 %v607
        %v855 = vpop.f32.mrb[0].mxu0
        %v856 = vadd.f32 0.0, %v855
        %v857 = vpop.f32.mrb[0].mxu0
        %v858 = vpop.f32.mrb[0].mxu0
        %v859 = vadd.f32 0.0, %v858
        %v860 = vpop.f32.mrb[0].mxu0
        %861 = vmatprep.mubr.bf16.mxu0 %v610
        %862 = vmatmul.mubr.bf16.gmra.mrb[0].mxu0 %v609
        %v863 = vpop.f32.mrb[0].mxu0
        %v864 = vadd.f32 0.0, %v863
        %v865 = vpop.f32.mrb[0].mxu0
        %v866 = vpop.f32.mrb[0].mxu0
        %v867 = vadd.f32 0.0, %v866
        %v868 = vpop.f32.mrb[0].mxu0
        %869 = vmatprep.mubr.bf16.mxu0 %v612
        %870 = vmatmul.mubr.bf16.gmra.mrb[0].mxu0 %v611
        %v871 = vpop.f32.mrb[0].mxu0
        %v872 = vadd.f32 0.0, %v871
        %v873 = vpop.f32.mrb[0].mxu0
        %v874 = vpop.f32.mrb[0].mxu0
        %v875 = vadd.f32 0.0, %v874
        %v876 = vpop.f32.mrb[0].mxu0
        %877 = vmatprep.mubr.bf16.mxu0 %v614
        %878 = vmatmul.mubr.bf16.gmra.mrb[0].mxu0 %v613
        %v879 = vpop.f32.mrb[0].mxu0
        %v880 = vadd.f32 0.0, %v879
        %v881 = vpop.f32.mrb[0].mxu0
        %v882 = vpop.f32.mrb[0].mxu0
        %v883 = vadd.f32 0.0, %v882
        %v884 = vpop.f32.mrb[0].mxu0
        %885 = vmatprep.mubr.bf16.mxu0 %v616
        %886 = vmatmul.mubr.bf16.gmra.mrb[0].mxu0 %v615
        %v887 = vpop.f32.mrb[0].mxu0
        %v888 = vadd.f32 0.0, %v887
        %v889 = vpop.f32.mrb[0].mxu0
        %v890 = vpop.f32.mrb[0].mxu0
        %v891 = vadd.f32 0.0, %v890
        %v892 = vpop.f32.mrb[0].mxu0
        %893 = vmatprep.mubr.bf16.mxu0 %v618
        %894 = vmatmul.mubr.bf16.gmra.mrb[0].mxu0 %v617
        %v895 = vpop.f32.mrb[0].mxu0
        %v896 = vadd.f32 0.0, %v895
        %v897 = vpop.f32.mrb[0].mxu0
        %v898 = vpop.f32.mrb[0].mxu0
        %v899 = vadd.f32 0.0, %v898
        %v900 = vpop.f32.mrb[0].mxu0
        %901 = vmatprep.mubr.bf16.mxu0 %v620
        %902 = vmatmul.mubr.bf16.gmra.mrb[0].mxu0 %v619
        %v903 = vpop.f32.mrb[0].mxu0
        %v904 = vadd.f32 0.0, %v903
        %v905 = vpop.f32.mrb[0].mxu0
        %v906 = vpop.f32.mrb[0].mxu0
        %v907 = vadd.f32 0.0, %v906
        %v908 = vpop.f32.mrb[0].mxu0
        %909 = vdwg.mxu0
        %v910 = vpack.c.bf16 %v787, %v784
        %v911 = vpack.c.bf16 %v795, %v792
        %v912 = vpack.c.bf16 %v803, %v800
        %v913 = vpack.c.bf16 %v811, %v808
        %v914 = vpack.c.bf16 %v819, %v816
        %v915 = vpack.c.bf16 %v827, %v824
        %v916 = vpack.c.bf16 %v835, %v832
        %v917 = vpack.c.bf16 %v843, %v840
        %v918 = vpack.c.bf16 %v851, %v848
        %v919 = vpack.c.bf16 %v859, %v856
        %v920 = vpack.c.bf16 %v867, %v864
        %v921 = vpack.c.bf16 %v875, %v872
        %v922 = vpack.c.bf16 %v883, %v880
        %v923 = vpack.c.bf16 %v891, %v888
        %v924 = vpack.c.bf16 %v899, %v896
        %v925 = vpack.c.bf16 %v907, %v904
        %v926 = vld [vmem:[%s3] sm:$0xf]
        %v927 = vld [vmem:[%s4] sm:$0x1]
        %v929 = vlaneseq
        %v930 = vshrl.u32 %v929, 7
        %v931 = vsub.s32 0, %v930
        %v932 = vrot.slane %v927, %v931
        %vm934 = vcmask 64512
        %v936 = vsel %vm934, %v910, 0
        %v939 = vsel %vm934, %v911, 0
        %v942 = vsel %vm934, %v912, 0
        %v945 = vsel %vm934, %v913, 0
        %v948 = vsel %vm934, %v914, 0
        %v951 = vsel %vm934, %v915, 0
        %v954 = vsel %vm934, %v916, 0
        %v957 = vsel %vm934, %v917, 0
        %v960 = vsel %vm934, %v918, 0
        %v963 = vsel %vm934, %v919, 0
        %v966 = vsel %vm934, %v920, 0
        %v969 = vsel %vm934, %v921, 0
        %v972 = vsel %vm934, %v922, 0
        %v975 = vsel %vm934, %v923, 0
        %v978 = vsel %vm934, %v924, 0
        %v981 = vsel %vm934, %v925, 0
        %vm983 = vcmask 1043456
        %v985 = vsel %vm983, %v926, 0
        %987 = vmatprep.subr.bf16.mxu0 0
        %988 = vmatpush1.bf16.msra.mxu0 %v985
        %989 = vmatprep.subr.bf16.mxu0 0
        %990 = vmatpush1.bf16.msra.mxu0 0
        %991 = vmatprep.subr.bf16.mxu0 0
        %992 = vmatpush1.bf16.msra.mxu0 0
        %993 = vmatprep.subr.bf16.mxu0 0
        %994 = vmatpush1.bf16.msra.mxu0 0
        %995 = vmatprep.subr.bf16.mxu0 0
        %996 = vmatpush1.bf16.msra.mxu0 0
        %997 = vmatprep.subr.bf16.mxu0 0
        %998 = vmatpush1.bf16.msra.mxu0 0
        %999 = vmatprep.subr.bf16.mxu0 0
        %1000 = vmatpush1.bf16.msra.mxu0 0
        %1001 = vmatprep.subr.bf16.mxu0 0
        %1002 = vmatpush1.bf16.msra.mxu0 0
        %1003 = vmatprep.subr.bf16.mxu0 0
        %1004 = vmatpush1.bf16.msra.mxu0 0
        %1005 = vmatprep.subr.bf16.mxu0 0
        %1006 = vmatpush1.bf16.msra.mxu0 0
        %1007 = vmatprep.subr.bf16.mxu0 0
        %1008 = vmatpush1.bf16.msra.mxu0 0
        %1009 = vmatprep.subr.bf16.mxu0 0
        %1010 = vmatpush1.bf16.msra.mxu0 0
        %1011 = vmatprep.subr.bf16.mxu0 0
        %1012 = vmatpush1.bf16.msra.mxu0 0
        %1013 = vmatprep.subr.bf16.mxu0 0
        %1014 = vmatpush1.bf16.msra.mxu0 0
        %1015 = vmatprep.subr.bf16.mxu0 0
        %1016 = vmatpush1.bf16.msra.mxu0 0
        %1017 = vmatprep.subr.bf16.mxu0 0
        %1018 = vmatpush1.bf16.msra.mxu0 0
        %1019 = vmatprep.mubr.bf16.mxu0 0
        %1020 = vmatmul.mubr.bf16.gmra.mrb[0].mxu0 %v936
        %v1021 = vpop.f32.mrb[0].mxu0
        %v1022 = vadd.f32 %v932, %v1021
        %v1023 = vpop.f32.mrb[0].mxu0
        %v1024 = vpop.f32.mrb[0].mxu0
        %v1025 = vadd.f32 %v932, %v1024
        %v1026 = vpop.f32.mrb[0].mxu0
        %1027 = vmatprep.mubr.bf16.mxu0 0
        %1028 = vmatmul.mubr.bf16.gmra.mrb[0].mxu0 %v939
        %v1029 = vpop.f32.mrb[0].mxu0
        %v1030 = vadd.f32 %v932, %v1029
        %v1031 = vpop.f32.mrb[0].mxu0
        %v1032 = vpop.f32.mrb[0].mxu0
        %v1033 = vadd.f32 %v932, %v1032
        %v1034 = vpop.f32.mrb[0].mxu0
        %1035 = vmatprep.mubr.bf16.mxu0 0
        %1036 = vmatmul.mubr.bf16.gmra.mrb[0].mxu0 %v942
        %v1037 = vpop.f32.mrb[0].mxu0
        %v1038 = vadd.f32 %v932, %v1037
        %v1039 = vpop.f32.mrb[0].mxu0
        %v1040 = vpop.f32.mrb[0].mxu0
        %v1041 = vadd.f32 %v932, %v1040
        %v1042 = vpop.f32.mrb[0].mxu0
        %1043 = vmatprep.mubr.bf16.mxu0 0
        %1044 = vmatmul.mubr.bf16.gmra.mrb[0].mxu0 %v945
        %v1045 = vpop.f32.mrb[0].mxu0
        %v1046 = vadd.f32 %v932, %v1045
        %v1047 = vpop.f32.mrb[0].mxu0
        %v1048 = vpop.f32.mrb[0].mxu0
        %v1049 = vadd.f32 %v932, %v1048
        %v1050 = vpop.f32.mrb[0].mxu0
        %1051 = vmatprep.mubr.bf16.mxu0 0
        %1052 = vmatmul.mubr.bf16.gmra.mrb[0].mxu0 %v948
        %v1053 = vpop.f32.mrb[0].mxu0
        %v1054 = vadd.f32 %v932, %v1053
        %v1055 = vpop.f32.mrb[0].mxu0
        %v1056 = vpop.f32.mrb[0].mxu0
        %v1057 = vadd.f32 %v932, %v1056
        %v1058 = vpop.f32.mrb[0].mxu0
        %1059 = vmatprep.mubr.bf16.mxu0 0
        %1060 = vmatmul.mubr.bf16.gmra.mrb[0].mxu0 %v951
        %v1061 = vpop.f32.mrb[0].mxu0
        %v1062 = vadd.f32 %v932, %v1061
        %v1063 = vpop.f32.mrb[0].mxu0
        %v1064 = vpop.f32.mrb[0].mxu0
        %v1065 = vadd.f32 %v932, %v1064
        %v1066 = vpop.f32.mrb[0].mxu0
        %1067 = vmatprep.mubr.bf16.mxu0 0
        %1068 = vmatmul.mubr.bf16.gmra.mrb[0].mxu0 %v954
        %v1069 = vpop.f32.mrb[0].mxu0
        %v1070 = vadd.f32 %v932, %v1069
        %v1071 = vpop.f32.mrb[0].mxu0
        %v1072 = vpop.f32.mrb[0].mxu0
        %v1073 = vadd.f32 %v932, %v1072
        %v1074 = vpop.f32.mrb[0].mxu0
        %1075 = vmatprep.mubr.bf16.mxu0 0
        %1076 = vmatmul.mubr.bf16.gmra.mrb[0].mxu0 %v957
        %v1077 = vpop.f32.mrb[0].mxu0
        %v1078 = vadd.f32 %v932, %v1077
        %v1079 = vpop.f32.mrb[0].mxu0
        %v1080 = vpop.f32.mrb[0].mxu0
        %v1081 = vadd.f32 %v932, %v1080
        %v1082 = vpop.f32.mrb[0].mxu0
        %1083 = vmatprep.mubr.bf16.mxu0 0
        %1084 = vmatmul.mubr.bf16.gmra.mrb[0].mxu0 %v960
        %v1085 = vpop.f32.mrb[0].mxu0
        %v1086 = vadd.f32 %v932, %v1085
        %v1087 = vpop.f32.mrb[0].mxu0
        %v1088 = vpop.f32.mrb[0].mxu0
        %v1089 = vadd.f32 %v932, %v1088
        %v1090 = vpop.f32.mrb[0].mxu0
        %1091 = vmatprep.mubr.bf16.mxu0 0
        %1092 = vmatmul.mubr.bf16.gmra.mrb[0].mxu0 %v963
        %v1093 = vpop.f32.mrb[0].mxu0
        %v1094 = vadd.f32 %v932, %v1093
        %v1095 = vpop.f32.mrb[0].mxu0
        %v1096 = vpop.f32.mrb[0].mxu0
        %v1097 = vadd.f32 %v932, %v1096
        %v1098 = vpop.f32.mrb[0].mxu0
        %1099 = vmatprep.mubr.bf16.mxu0 0
        %1100 = vmatmul.mubr.bf16.gmra.mrb[0].mxu0 %v966
        %v1101 = vpop.f32.mrb[0].mxu0
        %v1102 = vadd.f32 %v932, %v1101
        %v1103 = vpop.f32.mrb[0].mxu0
        %v1104 = vpop.f32.mrb[0].mxu0
        %v1105 = vadd.f32 %v932, %v1104
        %v1106 = vpop.f32.mrb[0].mxu0
        %1107 = vmatprep.mubr.bf16.mxu0 0
        %1108 = vmatmul.mubr.bf16.gmra.mrb[0].mxu0 %v969
        %v1109 = vpop.f32.mrb[0].mxu0
        %v1110 = vadd.f32 %v932, %v1109
        %v1111 = vpop.f32.mrb[0].mxu0
        %v1112 = vpop.f32.mrb[0].mxu0
        %v1113 = vadd.f32 %v932, %v1112
        %v1114 = vpop.f32.mrb[0].mxu0
        %1115 = vmatprep.mubr.bf16.mxu0 0
        %1116 = vmatmul.mubr.bf16.gmra.mrb[0].mxu0 %v972
        %v1117 = vpop.f32.mrb[0].mxu0
        %v1118 = vadd.f32 %v932, %v1117
        %v1119 = vpop.f32.mrb[0].mxu0
        %v1120 = vpop.f32.mrb[0].mxu0
        %v1121 = vadd.f32 %v932, %v1120
        %v1122 = vpop.f32.mrb[0].mxu0
        %1123 = vmatprep.mubr.bf16.mxu0 0
        %1124 = vmatmul.mubr.bf16.gmra.mrb[0].mxu0 %v975
        %v1125 = vpop.f32.mrb[0].mxu0
        %v1126 = vadd.f32 %v932, %v1125
        %v1127 = vpop.f32.mrb[0].mxu0
        %v1128 = vpop.f32.mrb[0].mxu0
        %v1129 = vadd.f32 %v932, %v1128
        %v1130 = vpop.f32.mrb[0].mxu0
        %1131 = vmatprep.mubr.bf16.mxu0 0
        %1132 = vmatmul.mubr.bf16.gmra.mrb[0].mxu0 %v978
        %v1133 = vpop.f32.mrb[0].mxu0
        %v1134 = vadd.f32 %v932, %v1133
        %v1135 = vpop.f32.mrb[0].mxu0
        %v1136 = vpop.f32.mrb[0].mxu0
        %v1137 = vadd.f32 %v932, %v1136
        %v1138 = vpop.f32.mrb[0].mxu0
        %1139 = vmatprep.mubr.bf16.mxu0 0
        %1140 = vmatmul.mubr.bf16.gmra.mrb[0].mxu0 %v981
        %v1141 = vpop.f32.mrb[0].mxu0
        %v1142 = vadd.f32 %v932, %v1141
        %v1143 = vpop.f32.mrb[0].mxu0
        %v1144 = vpop.f32.mrb[0].mxu0
        %v1145 = vadd.f32 %v932, %v1144
        %v1146 = vpop.f32.mrb[0].mxu0
        %1147 = vdwg.mxu0
        %v1148 = vmax.f32 %v1022, 0.0
        %v1149 = vmax.f32 %v1025, 0.0
        %v1150 = vmax.f32 %v1030, 0.0
        %v1151 = vmax.f32 %v1033, 0.0
        %v1152 = vmax.f32 %v1038, 0.0
        %v1153 = vmax.f32 %v1041, 0.0
        %v1154 = vmax.f32 %v1046, 0.0
        %v1155 = vmax.f32 %v1049, 0.0
        %v1156 = vmax.f32 %v1054, 0.0
        %v1157 = vmax.f32 %v1057, 0.0
        %v1158 = vmax.f32 %v1062, 0.0
        %v1159 = vmax.f32 %v1065, 0.0
        %v1160 = vmax.f32 %v1070, 0.0
        %v1161 = vmax.f32 %v1073, 0.0
        %v1162 = vmax.f32 %v1078, 0.0
        %v1163 = vmax.f32 %v1081, 0.0
        %v1164 = vmax.f32 %v1086, 0.0
        %v1165 = vmax.f32 %v1089, 0.0
        %v1166 = vmax.f32 %v1094, 0.0
        %v1167 = vmax.f32 %v1097, 0.0
        %v1168 = vmax.f32 %v1102, 0.0
        %v1169 = vmax.f32 %v1105, 0.0
        %v1170 = vmax.f32 %v1110, 0.0
        %v1171 = vmax.f32 %v1113, 0.0
        %v1172 = vmax.f32 %v1118, 0.0
        %v1173 = vmax.f32 %v1121, 0.0
        %v1174 = vmax.f32 %v1126, 0.0
        %v1175 = vmax.f32 %v1129, 0.0
        %v1176 = vmax.f32 %v1134, 0.0
        %v1177 = vmax.f32 %v1137, 0.0
        %v1178 = vmax.f32 %v1142, 0.0
        %v1179 = vmax.f32 %v1145, 0.0
        %v1180 = vpack.c.bf16 %v1149, %v1148
        %v1181 = vpack.c.bf16 %v1151, %v1150
        %v1182 = vpack.c.bf16 %v1153, %v1152
        %v1183 = vpack.c.bf16 %v1155, %v1154
        %v1184 = vpack.c.bf16 %v1157, %v1156
        %v1185 = vpack.c.bf16 %v1159, %v1158
        %v1186 = vpack.c.bf16 %v1161, %v1160
        %v1187 = vpack.c.bf16 %v1163, %v1162
        %v1188 = vpack.c.bf16 %v1165, %v1164
        %v1189 = vpack.c.bf16 %v1167, %v1166
        %v1190 = vpack.c.bf16 %v1169, %v1168
        %v1191 = vpack.c.bf16 %v1171, %v1170
        %v1192 = vpack.c.bf16 %v1173, %v1172
        %v1193 = vpack.c.bf16 %v1175, %v1174
        %v1194 = vpack.c.bf16 %v1177, %v1176
        %v1195 = vpack.c.bf16 %v1179, %v1178
        %1196 = vmatprep.subr.bf16.mxu0 0
        %1197 = vmatpush1.bf16.msra.mxu0 %v1180
        %1198 = vmatprep.subr.bf16.mxu0 0
        %1199 = vmatpush1.bf16.msra.mxu0 %v1181
        %1200 = vmatprep.subr.bf16.mxu0 0
        %1201 = vmatpush1.bf16.msra.mxu0 %v1182
        %1202 = vmatprep.subr.bf16.mxu0 0
        %1203 = vmatpush1.bf16.msra.mxu0 %v1183
        %1204 = vmatprep.subr.bf16.mxu0 0
        %1205 = vmatpush1.bf16.msra.mxu0 %v1184
        %1206 = vmatprep.subr.bf16.mxu0 0
        %1207 = vmatpush1.bf16.msra.mxu0 %v1185
        %1208 = vmatprep.subr.bf16.mxu0 0
        %1209 = vmatpush1.bf16.msra.mxu0 %v1186
        %1210 = vmatprep.subr.bf16.mxu0 0
        %1211 = vmatpush1.bf16.msra.mxu0 %v1187
        %1212 = vmatprep.subr.bf16.mxu0 0
        %1213 = vmatpush1.bf16.msra.mxu0 %v1188
        %1214 = vmatprep.subr.bf16.mxu0 0
        %1215 = vmatpush1.bf16.msra.mxu0 %v1189
        %1216 = vmatprep.subr.bf16.mxu0 0
        %1217 = vmatpush1.bf16.msra.mxu0 %v1190
        %1218 = vmatprep.subr.bf16.mxu0 0
        %1219 = vmatpush1.bf16.msra.mxu0 %v1191
        %1220 = vmatprep.subr.bf16.mxu0 0
        %1221 = vmatpush1.bf16.msra.mxu0 %v1192
        %1222 = vmatprep.subr.bf16.mxu0 0
        %1223 = vmatpush1.bf16.msra.mxu0 %v1193
        %1224 = vmatprep.subr.bf16.mxu0 0
        %1225 = vmatpush1.bf16.msra.mxu0 %v1194
        %1226 = vmatprep.subr.bf16.mxu0 0
        %1227 = vmatpush1.bf16.msra.mxu0 %v1195
        %1228 = vmatprep.mubr.bf16.mxu0 %v590
        %1229 = vmatmul.mubr.bf16.gmra.mrb[0].mxu0 %v589
        %v1230 = vpop.f32.mrb[0].mxu0
        %v1231 = vadd.f32 0.0, %v1230
        %v1232 = vpop.f32.mrb[0].mxu0
        %v1233 = vpop.f32.mrb[0].mxu0
        %v1234 = vadd.f32 0.0, %v1233
        %v1235 = vpop.f32.mrb[0].mxu0
        %1236 = vmatprep.mubr.bf16.mxu0 %v592
        %1237 = vmatmul.mubr.bf16.gmra.mrb[0].mxu0 %v591
        %v1238 = vpop.f32.mrb[0].mxu0
        %v1239 = vadd.f32 0.0, %v1238
        %v1240 = vpop.f32.mrb[0].mxu0
        %v1241 = vpop.f32.mrb[0].mxu0
        %v1242 = vadd.f32 0.0, %v1241
        %v1243 = vpop.f32.mrb[0].mxu0
        %1244 = vmatprep.mubr.bf16.mxu0 %v594
        %1245 = vmatmul.mubr.bf16.gmra.mrb[0].mxu0 %v593
        %v1246 = vpop.f32.mrb[0].mxu0
        %v1247 = vadd.f32 0.0, %v1246
        %v1248 = vpop.f32.mrb[0].mxu0
        %v1249 = vpop.f32.mrb[0].mxu0
        %v1250 = vadd.f32 0.0, %v1249
        %v1251 = vpop.f32.mrb[0].mxu0
        %1252 = vmatprep.mubr.bf16.mxu0 %v596
        %1253 = vmatmul.mubr.bf16.gmra.mrb[0].mxu0 %v595
        %v1254 = vpop.f32.mrb[0].mxu0
        %v1255 = vadd.f32 0.0, %v1254
        %v1256 = vpop.f32.mrb[0].mxu0
        %v1257 = vpop.f32.mrb[0].mxu0
        %v1258 = vadd.f32 0.0, %v1257
        %v1259 = vpop.f32.mrb[0].mxu0
        %1260 = vmatprep.mubr.bf16.mxu0 %v598
        %1261 = vmatmul.mubr.bf16.gmra.mrb[0].mxu0 %v597
        %v1262 = vpop.f32.mrb[0].mxu0
        %v1263 = vadd.f32 0.0, %v1262
        %v1264 = vpop.f32.mrb[0].mxu0
        %v1265 = vpop.f32.mrb[0].mxu0
        %v1266 = vadd.f32 0.0, %v1265
        %v1267 = vpop.f32.mrb[0].mxu0
        %1268 = vmatprep.mubr.bf16.mxu0 %v600
        %1269 = vmatmul.mubr.bf16.gmra.mrb[0].mxu0 %v599
        %v1270 = vpop.f32.mrb[0].mxu0
        %v1271 = vadd.f32 0.0, %v1270
        %v1272 = vpop.f32.mrb[0].mxu0
        %v1273 = vpop.f32.mrb[0].mxu0
        %v1274 = vadd.f32 0.0, %v1273
        %v1275 = vpop.f32.mrb[0].mxu0
        %1276 = vmatprep.mubr.bf16.mxu0 %v602
        %1277 = vmatmul.mubr.bf16.gmra.mrb[0].mxu0 %v601
        %v1278 = vpop.f32.mrb[0].mxu0
        %v1279 = vadd.f32 0.0, %v1278
        %v1280 = vpop.f32.mrb[0].mxu0
        %v1281 = vpop.f32.mrb[0].mxu0
        %v1282 = vadd.f32 0.0, %v1281
        %v1283 = vpop.f32.mrb[0].mxu0
        %1284 = vmatprep.mubr.bf16.mxu0 %v604
        %1285 = vmatmul.mubr.bf16.gmra.mrb[0].mxu0 %v603
        %v1286 = vpop.f32.mrb[0].mxu0
        %v1287 = vadd.f32 0.0, %v1286
        %v1288 = vpop.f32.mrb[0].mxu0
        %v1289 = vpop.f32.mrb[0].mxu0
        %v1290 = vadd.f32 0.0, %v1289
        %v1291 = vpop.f32.mrb[0].mxu0
        %1292 = vmatprep.mubr.bf16.mxu0 %v606
        %1293 = vmatmul.mubr.bf16.gmra.mrb[0].mxu0 %v605
        %v1294 = vpop.f32.mrb[0].mxu0
        %v1295 = vadd.f32 0.0, %v1294
        %v1296 = vpop.f32.mrb[0].mxu0
        %v1297 = vpop.f32.mrb[0].mxu0
        %v1298 = vadd.f32 0.0, %v1297
        %v1299 = vpop.f32.mrb[0].mxu0
        %1300 = vmatprep.mubr.bf16.mxu0 %v608
        %1301 = vmatmul.mubr.bf16.gmra.mrb[0].mxu0 %v607
        %v1302 = vpop.f32.mrb[0].mxu0
        %v1303 = vadd.f32 0.0, %v1302
        %v1304 = vpop.f32.mrb[0].mxu0
        %v1305 = vpop.f32.mrb[0].mxu0
        %v1306 = vadd.f32 0.0, %v1305
        %v1307 = vpop.f32.mrb[0].mxu0
        %1308 = vmatprep.mubr.bf16.mxu0 %v610
        %1309 = vmatmul.mubr.bf16.gmra.mrb[0].mxu0 %v609
        %v1310 = vpop.f32.mrb[0].mxu0
        %v1311 = vadd.f32 0.0, %v1310
        %v1312 = vpop.f32.mrb[0].mxu0
        %v1313 = vpop.f32.mrb[0].mxu0
        %v1314 = vadd.f32 0.0, %v1313
        %v1315 = vpop.f32.mrb[0].mxu0
        %1316 = vmatprep.mubr.bf16.mxu0 %v612
        %1317 = vmatmul.mubr.bf16.gmra.mrb[0].mxu0 %v611
        %v1318 = vpop.f32.mrb[0].mxu0
        %v1319 = vadd.f32 0.0, %v1318
        %v1320 = vpop.f32.mrb[0].mxu0
        %v1321 = vpop.f32.mrb[0].mxu0
        %v1322 = vadd.f32 0.0, %v1321
        %v1323 = vpop.f32.mrb[0].mxu0
        %1324 = vmatprep.mubr.bf16.mxu0 %v614
        %1325 = vmatmul.mubr.bf16.gmra.mrb[0].mxu0 %v613
        %v1326 = vpop.f32.mrb[0].mxu0
        %v1327 = vadd.f32 0.0, %v1326
        %v1328 = vpop.f32.mrb[0].mxu0
        %v1329 = vpop.f32.mrb[0].mxu0
        %v1330 = vadd.f32 0.0, %v1329
        %v1331 = vpop.f32.mrb[0].mxu0
        %1332 = vmatprep.mubr.bf16.mxu0 %v616
        %1333 = vmatmul.mubr.bf16.gmra.mrb[0].mxu0 %v615
        %v1334 = vpop.f32.mrb[0].mxu0
        %v1335 = vadd.f32 0.0, %v1334
        %v1336 = vpop.f32.mrb[0].mxu0
        %v1337 = vpop.f32.mrb[0].mxu0
        %v1338 = vadd.f32 0.0, %v1337
        %v1339 = vpop.f32.mrb[0].mxu0
        %1340 = vmatprep.mubr.bf16.mxu0 %v618
        %1341 = vmatmul.mubr.bf16.gmra.mrb[0].mxu0 %v617
        %v1342 = vpop.f32.mrb[0].mxu0
        %v1343 = vadd.f32 0.0, %v1342
        %v1344 = vpop.f32.mrb[0].mxu0
        %v1345 = vpop.f32.mrb[0].mxu0
        %v1346 = vadd.f32 0.0, %v1345
        %v1347 = vpop.f32.mrb[0].mxu0
        %1348 = vmatprep.mubr.bf16.mxu0 %v620
        %1349 = vmatmul.mubr.bf16.gmra.mrb[0].mxu0 %v619
        %v1350 = vpop.f32.mrb[0].mxu0
        %v1351 = vadd.f32 0.0, %v1350
        %v1352 = vpop.f32.mrb[0].mxu0
        %v1353 = vpop.f32.mrb[0].mxu0
        %v1354 = vadd.f32 0.0, %v1353
        %v1355 = vpop.f32.mrb[0].mxu0
        %1356 = vdwg.mxu0
        %v1357 = vpack.c.bf16 %v1234, %v1231
        %v1358 = vpack.c.bf16 %v1242, %v1239
        %v1359 = vpack.c.bf16 %v1250, %v1247
        %v1360 = vpack.c.bf16 %v1258, %v1255
        %v1361 = vpack.c.bf16 %v1266, %v1263
        %v1362 = vpack.c.bf16 %v1274, %v1271
        %v1363 = vpack.c.bf16 %v1282, %v1279
        %v1364 = vpack.c.bf16 %v1290, %v1287
        %v1365 = vpack.c.bf16 %v1298, %v1295
        %v1366 = vpack.c.bf16 %v1306, %v1303
        %v1367 = vpack.c.bf16 %v1314, %v1311
        %v1368 = vpack.c.bf16 %v1322, %v1319
        %v1369 = vpack.c.bf16 %v1330, %v1327
        %v1370 = vpack.c.bf16 %v1338, %v1335
        %v1371 = vpack.c.bf16 %v1346, %v1343
        %v1372 = vpack.c.bf16 %v1354, %v1351
        %v1373 = vld [vmem:[%s5] sm:$0xf]
        %v1374 = vld [vmem:[%s5 + $0x4] sm:$0xf]
        %v1375 = vld [vmem:[%s5 + $0x8] sm:$0xf]
        %v1376 = vld [vmem:[%s5 + $0xc] sm:$0xf]
        %v1377 = vld [vmem:[%s5 + $0x10] sm:$0xf]
        %v1378 = vld [vmem:[%s5 + $0x14] sm:$0xf]
        %v1379 = vld [vmem:[%s5 + $0x18] sm:$0xf]
        %v1380 = vld [vmem:[%s5 + $0x1c] sm:$0xf]
        %v1381 = vld [vmem:[%s5 + $0x20] sm:$0xf]
        %v1382 = vld [vmem:[%s5 + $0x24] sm:$0xf]
        %v1383 = vld [vmem:[%s5 + $0x28] sm:$0xf]
        %v1384 = vld [vmem:[%s5 + $0x2c] sm:$0xf]
        %v1385 = vld [vmem:[%s5 + $0x30] sm:$0xf]
        %v1386 = vld [vmem:[%s5 + $0x34] sm:$0xf]
        %v1387 = vld [vmem:[%s5 + $0x38] sm:$0xf]
        %v1388 = vld [vmem:[%s5 + $0x3c] sm:$0xf]
        %v1389 = vld [vmem:[%s6] sm:$0x1]
        %v1391 = vlaneseq
        %v1392 = vshrl.u32 %v1391, 7
        %v1393 = vsub.s32 0, %v1392
        %v1394 = vrot.slane %v1389, %v1393
        %v1412 = vunpack.c.l.b16 %v1373
        %v1413 = vunpack.c.l.b16 %v1374
        %v1414 = vunpack.c.l.b16 %v1375
        %v1415 = vunpack.c.l.b16 %v1376
        %v1416 = vunpack.c.l.b16 %v1377
        %v1417 = vunpack.c.l.b16 %v1378
        %v1418 = vunpack.c.l.b16 %v1379
        %v1419 = vunpack.c.l.b16 %v1380
        %v1420 = vunpack.c.l.b16 %v1381
        %v1421 = vunpack.c.l.b16 %v1382
        %v1422 = vunpack.c.l.b16 %v1383
        %v1423 = vunpack.c.l.b16 %v1384
        %v1424 = vunpack.c.l.b16 %v1385
        %v1425 = vunpack.c.l.b16 %v1386
        %v1426 = vunpack.c.l.b16 %v1387
        %v1427 = vunpack.c.l.b16 %v1388
        %v1428 = vpack.c.b16 %v1413, %v1412
        %v1429 = vpack.c.b16 %v1415, %v1414
        %v1430 = vpack.c.b16 %v1417, %v1416
        %v1431 = vpack.c.b16 %v1419, %v1418
        %v1432 = vpack.c.b16 %v1421, %v1420
        %v1433 = vpack.c.b16 %v1423, %v1422
        %v1434 = vpack.c.b16 %v1425, %v1424
        %v1435 = vpack.c.b16 %v1427, %v1426
        %1444 = vmatprep.subr.bf16.mxu0 0
        %1445 = vmatpush1.bf16.msra.mxu0 %v1428
        %1446 = vmatprep.subr.bf16.mxu0 0
        %1447 = vmatpush1.bf16.msra.mxu0 %v1429
        %1448 = vmatprep.subr.bf16.mxu0 0
        %1449 = vmatpush1.bf16.msra.mxu0 %v1430
        %1450 = vmatprep.subr.bf16.mxu0 0
        %1451 = vmatpush1.bf16.msra.mxu0 %v1431
        %1452 = vmatprep.subr.bf16.mxu0 0
        %1453 = vmatpush1.bf16.msra.mxu0 %v1432
        %1454 = vmatprep.subr.bf16.mxu0 0
        %1455 = vmatpush1.bf16.msra.mxu0 %v1433
        %1456 = vmatprep.subr.bf16.mxu0 0
        %1457 = vmatpush1.bf16.msra.mxu0 %v1434
        %1458 = vmatprep.subr.bf16.mxu0 0
        %1459 = vmatpush1.bf16.msra.mxu0 %v1435
        %1460 = vmatprep.subr.bf16.mxu0 0
        %1461 = vmatpush1.bf16.msra.mxu0 0
        %1462 = vmatprep.subr.bf16.mxu0 0
        %1463 = vmatpush1.bf16.msra.mxu0 0
        %1464 = vmatprep.subr.bf16.mxu0 0
        %1465 = vmatpush1.bf16.msra.mxu0 0
        %1466 = vmatprep.subr.bf16.mxu0 0
        %1467 = vmatpush1.bf16.msra.mxu0 0
        %1468 = vmatprep.subr.bf16.mxu0 0
        %1469 = vmatpush1.bf16.msra.mxu0 0
        %1470 = vmatprep.subr.bf16.mxu0 0
        %1471 = vmatpush1.bf16.msra.mxu0 0
        %1472 = vmatprep.subr.bf16.mxu0 0
        %1473 = vmatpush1.bf16.msra.mxu0 0
        %1474 = vmatprep.subr.bf16.mxu0 0
        %1475 = vmatpush1.bf16.msra.mxu0 0
        %1476 = vmatprep.mubr.bf16.mxu0 0
        %1477 = vmatmul.mubr.bf16.gmra.mrb[0].mxu0 %v1357
        %v1478 = vpop.f32.mrb[0].mxu0
        %v1479 = vadd.f32 %v1394, %v1478
        %v1480 = vpop.f32.mrb[0].mxu0
        %v1481 = vpop.f32.mrb[0].mxu0
        %v1482 = vadd.f32 %v1394, %v1481
        %v1483 = vpop.f32.mrb[0].mxu0
        %1484 = vmatprep.mubr.bf16.mxu0 0
        %1485 = vmatmul.mubr.bf16.gmra.mrb[0].mxu0 %v1358
        %v1486 = vpop.f32.mrb[0].mxu0
        %v1487 = vadd.f32 %v1394, %v1486
        %v1488 = vpop.f32.mrb[0].mxu0
        %v1489 = vpop.f32.mrb[0].mxu0
        %v1490 = vadd.f32 %v1394, %v1489
        %v1491 = vpop.f32.mrb[0].mxu0
        %1492 = vmatprep.mubr.bf16.mxu0 0
        %1493 = vmatmul.mubr.bf16.gmra.mrb[0].mxu0 %v1359
        %v1494 = vpop.f32.mrb[0].mxu0
        %v1495 = vadd.f32 %v1394, %v1494
        %v1496 = vpop.f32.mrb[0].mxu0
        %v1497 = vpop.f32.mrb[0].mxu0
        %v1498 = vadd.f32 %v1394, %v1497
        %v1499 = vpop.f32.mrb[0].mxu0
        %1500 = vmatprep.mubr.bf16.mxu0 0
        %1501 = vmatmul.mubr.bf16.gmra.mrb[0].mxu0 %v1360
        %v1502 = vpop.f32.mrb[0].mxu0
        %v1503 = vadd.f32 %v1394, %v1502
        %v1504 = vpop.f32.mrb[0].mxu0
        %v1505 = vpop.f32.mrb[0].mxu0
        %v1506 = vadd.f32 %v1394, %v1505
        %v1507 = vpop.f32.mrb[0].mxu0
        %1508 = vmatprep.mubr.bf16.mxu0 0
        %1509 = vmatmul.mubr.bf16.gmra.mrb[0].mxu0 %v1361
        %v1510 = vpop.f32.mrb[0].mxu0
        %v1511 = vadd.f32 %v1394, %v1510
        %v1512 = vpop.f32.mrb[0].mxu0
        %v1513 = vpop.f32.mrb[0].mxu0
        %v1514 = vadd.f32 %v1394, %v1513
        %v1515 = vpop.f32.mrb[0].mxu0
        %1516 = vmatprep.mubr.bf16.mxu0 0
        %1517 = vmatmul.mubr.bf16.gmra.mrb[0].mxu0 %v1362
        %v1518 = vpop.f32.mrb[0].mxu0
        %v1519 = vadd.f32 %v1394, %v1518
        %v1520 = vpop.f32.mrb[0].mxu0
        %v1521 = vpop.f32.mrb[0].mxu0
        %v1522 = vadd.f32 %v1394, %v1521
        %v1523 = vpop.f32.mrb[0].mxu0
        %1524 = vmatprep.mubr.bf16.mxu0 0
        %1525 = vmatmul.mubr.bf16.gmra.mrb[0].mxu0 %v1363
        %v1526 = vpop.f32.mrb[0].mxu0
        %v1527 = vadd.f32 %v1394, %v1526
        %v1528 = vpop.f32.mrb[0].mxu0
        %v1529 = vpop.f32.mrb[0].mxu0
        %v1530 = vadd.f32 %v1394, %v1529
        %v1531 = vpop.f32.mrb[0].mxu0
        %1532 = vmatprep.mubr.bf16.mxu0 0
        %1533 = vmatmul.mubr.bf16.gmra.mrb[0].mxu0 %v1364
        %v1534 = vpop.f32.mrb[0].mxu0
        %v1535 = vadd.f32 %v1394, %v1534
        %v1536 = vpop.f32.mrb[0].mxu0
        %v1537 = vpop.f32.mrb[0].mxu0
        %v1538 = vadd.f32 %v1394, %v1537
        %v1539 = vpop.f32.mrb[0].mxu0
        %1540 = vmatprep.mubr.bf16.mxu0 0
        %1541 = vmatmul.mubr.bf16.gmra.mrb[0].mxu0 %v1365
        %v1542 = vpop.f32.mrb[0].mxu0
        %v1543 = vadd.f32 %v1394, %v1542
        %v1544 = vpop.f32.mrb[0].mxu0
        %v1545 = vpop.f32.mrb[0].mxu0
        %v1546 = vadd.f32 %v1394, %v1545
        %v1547 = vpop.f32.mrb[0].mxu0
        %1548 = vmatprep.mubr.bf16.mxu0 0
        %1549 = vmatmul.mubr.bf16.gmra.mrb[0].mxu0 %v1366
        %v1550 = vpop.f32.mrb[0].mxu0
        %v1551 = vadd.f32 %v1394, %v1550
        %v1552 = vpop.f32.mrb[0].mxu0
        %v1553 = vpop.f32.mrb[0].mxu0
        %v1554 = vadd.f32 %v1394, %v1553
        %v1555 = vpop.f32.mrb[0].mxu0
        %1556 = vmatprep.mubr.bf16.mxu0 0
        %1557 = vmatmul.mubr.bf16.gmra.mrb[0].mxu0 %v1367
        %v1558 = vpop.f32.mrb[0].mxu0
        %v1559 = vadd.f32 %v1394, %v1558
        %v1560 = vpop.f32.mrb[0].mxu0
        %v1561 = vpop.f32.mrb[0].mxu0
        %v1562 = vadd.f32 %v1394, %v1561
        %v1563 = vpop.f32.mrb[0].mxu0
        %1564 = vmatprep.mubr.bf16.mxu0 0
        %1565 = vmatmul.mubr.bf16.gmra.mrb[0].mxu0 %v1368
        %v1566 = vpop.f32.mrb[0].mxu0
        %v1567 = vadd.f32 %v1394, %v1566
        %v1568 = vpop.f32.mrb[0].mxu0
        %v1569 = vpop.f32.mrb[0].mxu0
        %v1570 = vadd.f32 %v1394, %v1569
        %v1571 = vpop.f32.mrb[0].mxu0
        %1572 = vmatprep.mubr.bf16.mxu0 0
        %1573 = vmatmul.mubr.bf16.gmra.mrb[0].mxu0 %v1369
        %v1574 = vpop.f32.mrb[0].mxu0
        %v1575 = vadd.f32 %v1394, %v1574
        %v1576 = vpop.f32.mrb[0].mxu0
        %v1577 = vpop.f32.mrb[0].mxu0
        %v1578 = vadd.f32 %v1394, %v1577
        %v1579 = vpop.f32.mrb[0].mxu0
        %1580 = vmatprep.mubr.bf16.mxu0 0
        %1581 = vmatmul.mubr.bf16.gmra.mrb[0].mxu0 %v1370
        %v1582 = vpop.f32.mrb[0].mxu0
        %v1583 = vadd.f32 %v1394, %v1582
        %v1584 = vpop.f32.mrb[0].mxu0
        %v1585 = vpop.f32.mrb[0].mxu0
        %v1586 = vadd.f32 %v1394, %v1585
        %v1587 = vpop.f32.mrb[0].mxu0
        %1588 = vmatprep.mubr.bf16.mxu0 0
        %1589 = vmatmul.mubr.bf16.gmra.mrb[0].mxu0 %v1371
        %v1590 = vpop.f32.mrb[0].mxu0
        %v1591 = vadd.f32 %v1394, %v1590
        %v1592 = vpop.f32.mrb[0].mxu0
        %v1593 = vpop.f32.mrb[0].mxu0
        %v1594 = vadd.f32 %v1394, %v1593
        %v1595 = vpop.f32.mrb[0].mxu0
        %1596 = vmatprep.mubr.bf16.mxu0 0
        %1597 = vmatmul.mubr.bf16.gmra.mrb[0].mxu0 %v1372
        %v1598 = vpop.f32.mrb[0].mxu0
        %v1599 = vadd.f32 %v1394, %v1598
        %v1600 = vpop.f32.mrb[0].mxu0
        %v1601 = vpop.f32.mrb[0].mxu0
        %v1602 = vadd.f32 %v1394, %v1601
        %v1603 = vpop.f32.mrb[0].mxu0
        %1604 = vdwg.mxu0
        %v1605 = vmax.f32 %v1479, 0.0
        %v1606 = vmax.f32 %v1482, 0.0
        %v1607 = vmax.f32 %v1487, 0.0
        %v1608 = vmax.f32 %v1490, 0.0
        %v1609 = vmax.f32 %v1495, 0.0
        %v1610 = vmax.f32 %v1498, 0.0
        %v1611 = vmax.f32 %v1503, 0.0
        %v1612 = vmax.f32 %v1506, 0.0
        %v1613 = vmax.f32 %v1511, 0.0
        %v1614 = vmax.f32 %v1514, 0.0
        %v1615 = vmax.f32 %v1519, 0.0
        %v1616 = vmax.f32 %v1522, 0.0
        %v1617 = vmax.f32 %v1527, 0.0
        %v1618 = vmax.f32 %v1530, 0.0
        %v1619 = vmax.f32 %v1535, 0.0
        %v1620 = vmax.f32 %v1538, 0.0
        %v1621 = vmax.f32 %v1543, 0.0
        %v1622 = vmax.f32 %v1546, 0.0
        %v1623 = vmax.f32 %v1551, 0.0
        %v1624 = vmax.f32 %v1554, 0.0
        %v1625 = vmax.f32 %v1559, 0.0
        %v1626 = vmax.f32 %v1562, 0.0
        %v1627 = vmax.f32 %v1567, 0.0
        %v1628 = vmax.f32 %v1570, 0.0
        %v1629 = vmax.f32 %v1575, 0.0
        %v1630 = vmax.f32 %v1578, 0.0
        %v1631 = vmax.f32 %v1583, 0.0
        %v1632 = vmax.f32 %v1586, 0.0
        %v1633 = vmax.f32 %v1591, 0.0
        %v1634 = vmax.f32 %v1594, 0.0
        %v1635 = vmax.f32 %v1599, 0.0
        %v1636 = vmax.f32 %v1602, 0.0
        %v1637 = vpack.c.bf16 %v1606, %v1605
        %v1638 = vpack.c.bf16 %v1608, %v1607
        %v1639 = vpack.c.bf16 %v1610, %v1609
        %v1640 = vpack.c.bf16 %v1612, %v1611
        %v1641 = vpack.c.bf16 %v1614, %v1613
        %v1642 = vpack.c.bf16 %v1616, %v1615
        %v1643 = vpack.c.bf16 %v1618, %v1617
        %v1644 = vpack.c.bf16 %v1620, %v1619
        %v1645 = vpack.c.bf16 %v1622, %v1621
        %v1646 = vpack.c.bf16 %v1624, %v1623
        %v1647 = vpack.c.bf16 %v1626, %v1625
        %v1648 = vpack.c.bf16 %v1628, %v1627
        %v1649 = vpack.c.bf16 %v1630, %v1629
        %v1650 = vpack.c.bf16 %v1632, %v1631
        %v1651 = vpack.c.bf16 %v1634, %v1633
        %v1652 = vpack.c.bf16 %v1636, %v1635
        %v1653 = vld [vmem:[%s2] sm:$0xff]
        %v1654 = vld [vmem:[%s2 + $0x8] sm:$0xff]
        %v1655 = vld [vmem:[%s2 + $0x10] sm:$0xff]
        %v1656 = vld [vmem:[%s2 + $0x18] sm:$0xff]
        %v1661 = vunpack.c.l.b16 %v1653
        %v1662 = vunpack.c.h.b16 %v1653
        %v1663 = vunpack.c.l.b16 %v1654
        %v1664 = vunpack.c.h.b16 %v1654
        %v1665 = vunpack.c.l.b16 %v1655
        %v1666 = vunpack.c.h.b16 %v1655
        %v1667 = vunpack.c.l.b16 %v1656
        %v1668 = vunpack.c.h.b16 %v1656
        %v1669 = vpack.c.b16 %v1663, %v1661
        %v1670 = vpack.c.b16 %v1664, %v1662
        %v1671 = vpack.c.b16 %v1667, %v1665
        %v1672 = vpack.c.b16 %v1668, %v1666
        %1677 = vmatprep.subr.bf16.mxu0 0
        %1678 = vmatpush1.bf16.msra.mxu0 %v1637
        %1679 = vmatprep.subr.bf16.mxu0 0
        %1680 = vmatpush1.bf16.msra.mxu0 %v1638
        %1681 = vmatprep.subr.bf16.mxu0 0
        %1682 = vmatpush1.bf16.msra.mxu0 %v1639
        %1683 = vmatprep.subr.bf16.mxu0 0
        %1684 = vmatpush1.bf16.msra.mxu0 %v1640
        %1685 = vmatprep.subr.bf16.mxu0 0
        %1686 = vmatpush1.bf16.msra.mxu0 %v1641
        %1687 = vmatprep.subr.bf16.mxu0 0
        %1688 = vmatpush1.bf16.msra.mxu0 %v1642
        %1689 = vmatprep.subr.bf16.mxu0 0
        %1690 = vmatpush1.bf16.msra.mxu0 %v1643
        %1691 = vmatprep.subr.bf16.mxu0 0
        %1692 = vmatpush1.bf16.msra.mxu0 %v1644
        %1693 = vmatprep.subr.bf16.mxu0 0
        %1694 = vmatpush1.bf16.msra.mxu0 %v1645
        %1695 = vmatprep.subr.bf16.mxu0 0
        %1696 = vmatpush1.bf16.msra.mxu0 %v1646
        %1697 = vmatprep.subr.bf16.mxu0 0
        %1698 = vmatpush1.bf16.msra.mxu0 %v1647
        %1699 = vmatprep.subr.bf16.mxu0 0
        %1700 = vmatpush1.bf16.msra.mxu0 %v1648
        %1701 = vmatprep.subr.bf16.mxu0 0
        %1702 = vmatpush1.bf16.msra.mxu0 %v1649
        %1703 = vmatprep.subr.bf16.mxu0 0
        %1704 = vmatpush1.bf16.msra.mxu0 %v1650
        %1705 = vmatprep.subr.bf16.mxu0 0
        %1706 = vmatpush1.bf16.msra.mxu0 %v1651
        %1707 = vmatprep.subr.bf16.mxu0 0
        %1708 = vmatpush1.bf16.msra.mxu0 %v1652
        %1709 = vmatprep.mubr.bf16.mxu0 %v1670
        %1710 = vmatmul.mubr.bf16.gmra.mrb[0].mxu0 %v1669
        %v1711 = vpop.f32.mrb[0].mxu0
        %v1712 = vadd.f32 0.0, %v1711
        %v1713 = vpop.f32.mrb[0].mxu0
        %v1714 = vpop.f32.mrb[0].mxu0
        %v1715 = vadd.f32 0.0, %v1714
        %v1716 = vpop.f32.mrb[0].mxu0
        %1717 = vmatprep.mubr.bf16.mxu0 %v1672
        %1718 = vmatmul.mubr.bf16.gmra.mrb[0].mxu0 %v1671
        %v1719 = vpop.f32.mrb[0].mxu0
        %v1720 = vadd.f32 0.0, %v1719
        %v1721 = vpop.f32.mrb[0].mxu0
        %v1722 = vpop.f32.mrb[0].mxu0
        %v1723 = vadd.f32 0.0, %v1722
        %v1724 = vpop.f32.mrb[0].mxu0
        %1725 = vdwg.mxu0
        %v1726 = vpack.c.bf16 %v1715, %v1712
        %v1727 = vpack.c.bf16 %v1723, %v1720
        %v1728 = vld [vmem:[%s7] sm:$0xf]
        %v1729 = vld [vmem:[%s7 + $0x4] sm:$0xf]
        %v1730 = vld [vmem:[%s7 + $0x8] sm:$0xf]
        %v1731 = vld [vmem:[%s7 + $0xc] sm:$0xf]
        %v1732 = vld [vmem:[%s7 + $0x10] sm:$0xf]
        %v1733 = vld [vmem:[%s7 + $0x14] sm:$0xf]
        %v1734 = vld [vmem:[%s7 + $0x18] sm:$0xf]
        %v1735 = vld [vmem:[%s7 + $0x1c] sm:$0xf]
        %v1736 = vld [vmem:[%s7 + $0x20] sm:$0xf]
        %v1737 = vld [vmem:[%s7 + $0x24] sm:$0xf]
        %v1738 = vld [vmem:[%s7 + $0x28] sm:$0xf]
        %v1739 = vld [vmem:[%s7 + $0x2c] sm:$0xf]
        %v1740 = vld [vmem:[%s7 + $0x30] sm:$0xf]
        %v1741 = vld [vmem:[%s7 + $0x34] sm:$0xf]
        %v1742 = vld [vmem:[%s7 + $0x38] sm:$0xf]
        %v1743 = vld [vmem:[%s7 + $0x3c] sm:$0xf]
        %v1744 = vld [vmem:[%s8] sm:$0x1]
        %v1746 = vlaneseq
        %v1747 = vshrl.u32 %v1746, 7
        %v1748 = vsub.s32 0, %v1747
        %v1749 = vrot.slane %v1744, %v1748
        %v1767 = vunpack.c.l.b16 %v1728
        %v1768 = vunpack.c.l.b16 %v1729
        %v1769 = vunpack.c.l.b16 %v1730
        %v1770 = vunpack.c.l.b16 %v1731
        %v1771 = vunpack.c.l.b16 %v1732
        %v1772 = vunpack.c.l.b16 %v1733
        %v1773 = vunpack.c.l.b16 %v1734
        %v1774 = vunpack.c.l.b16 %v1735
        %v1775 = vunpack.c.l.b16 %v1736
        %v1776 = vunpack.c.l.b16 %v1737
        %v1777 = vunpack.c.l.b16 %v1738
        %v1778 = vunpack.c.l.b16 %v1739
        %v1779 = vunpack.c.l.b16 %v1740
        %v1780 = vunpack.c.l.b16 %v1741
        %v1781 = vunpack.c.l.b16 %v1742
        %v1782 = vunpack.c.l.b16 %v1743
        %v1783 = vpack.c.b16 %v1768, %v1767
        %v1784 = vpack.c.b16 %v1770, %v1769
        %v1785 = vpack.c.b16 %v1772, %v1771
        %v1786 = vpack.c.b16 %v1774, %v1773
        %v1787 = vpack.c.b16 %v1776, %v1775
        %v1788 = vpack.c.b16 %v1778, %v1777
        %v1789 = vpack.c.b16 %v1780, %v1779
        %v1790 = vpack.c.b16 %v1782, %v1781
        %1799 = vmatprep.subr.bf16.mxu0 0
        %1800 = vmatpush1.bf16.msra.mxu0 %v1783
        %1801 = vmatprep.subr.bf16.mxu0 0
        %1802 = vmatpush1.bf16.msra.mxu0 %v1784
        %1803 = vmatprep.subr.bf16.mxu0 0
        %1804 = vmatpush1.bf16.msra.mxu0 %v1785
        %1805 = vmatprep.subr.bf16.mxu0 0
        %1806 = vmatpush1.bf16.msra.mxu0 %v1786
        %1807 = vmatprep.subr.bf16.mxu0 0
        %1808 = vmatpush1.bf16.msra.mxu0 %v1787
        %1809 = vmatprep.subr.bf16.mxu0 0
        %1810 = vmatpush1.bf16.msra.mxu0 %v1788
        %1811 = vmatprep.subr.bf16.mxu0 0
        %1812 = vmatpush1.bf16.msra.mxu0 %v1789
        %1813 = vmatprep.subr.bf16.mxu0 0
        %1814 = vmatpush1.bf16.msra.mxu0 %v1790
        %1815 = vmatprep.subr.bf16.mxu0 0
        %1816 = vmatpush1.bf16.msra.mxu0 0
        %1817 = vmatprep.subr.bf16.mxu0 0
        %1818 = vmatpush1.bf16.msra.mxu0 0
        %1819 = vmatprep.subr.bf16.mxu0 0
        %1820 = vmatpush1.bf16.msra.mxu0 0
        %1821 = vmatprep.subr.bf16.mxu0 0
        %1822 = vmatpush1.bf16.msra.mxu0 0
        %1823 = vmatprep.subr.bf16.mxu0 0
        %1824 = vmatpush1.bf16.msra.mxu0 0
        %1825 = vmatprep.subr.bf16.mxu0 0
        %1826 = vmatpush1.bf16.msra.mxu0 0
        %1827 = vmatprep.subr.bf16.mxu0 0
        %1828 = vmatpush1.bf16.msra.mxu0 0
        %1829 = vmatprep.subr.bf16.mxu0 0
        %1830 = vmatpush1.bf16.msra.mxu0 0
        %1831 = vmatprep.mubr.bf16.mxu0 0
        %1832 = vmatmul.mubr.bf16.gmra.mrb[0].mxu0 %v1726
        %v1833 = vpop.f32.mrb[0].mxu0
        %v1834 = vadd.f32 %v1749, %v1833
        %v1835 = vpop.f32.mrb[0].mxu0
        %v1836 = vpop.f32.mrb[0].mxu0
        %v1837 = vadd.f32 %v1749, %v1836
        %v1838 = vpop.f32.mrb[0].mxu0
        %1839 = vmatprep.mubr.bf16.mxu0 0
        %1840 = vmatmul.mubr.bf16.gmra.mrb[0].mxu0 %v1727
        %v1841 = vpop.f32.mrb[0].mxu0
        %v1842 = vadd.f32 %v1749, %v1841
        %v1843 = vpop.f32.mrb[0].mxu0
        %v1844 = vpop.f32.mrb[0].mxu0
        %v1845 = vadd.f32 %v1749, %v1844
        %v1846 = vpop.f32.mrb[0].mxu0
        %1847 = vdwg.mxu0
        %v1848 = vmax.f32 %v1834, 0.0
        %v1849 = vmax.f32 %v1837, 0.0
        %v1850 = vmax.f32 %v1842, 0.0
        %v1851 = vmax.f32 %v1845, 0.0
        %v1852 = vpack.c.bf16 %v1849, %v1848
        %v1853 = vpack.c.bf16 %v1851, %v1850
        %s1854 = scalar_lea.vmem %s7, 64
        %v1855 = vld [vmem:[%s1854] sm:$0xf]
        %v1856 = vld [vmem:[%s1854 + $0x4] sm:$0xf]
        %v1857 = vld [vmem:[%s1854 + $0x8] sm:$0xf]
        %v1858 = vld [vmem:[%s1854 + $0xc] sm:$0xf]
        %v1859 = vld [vmem:[%s1854 + $0x10] sm:$0xf]
        %v1860 = vld [vmem:[%s1854 + $0x14] sm:$0xf]
        %v1861 = vld [vmem:[%s1854 + $0x18] sm:$0xf]
        %v1862 = vld [vmem:[%s1854 + $0x1c] sm:$0xf]
        %v1863 = vld [vmem:[%s1854 + $0x20] sm:$0xf]
        %v1864 = vld [vmem:[%s1854 + $0x24] sm:$0xf]
        %v1865 = vld [vmem:[%s1854 + $0x28] sm:$0xf]
        %v1866 = vld [vmem:[%s1854 + $0x2c] sm:$0xf]
        %v1867 = vld [vmem:[%s1854 + $0x30] sm:$0xf]
        %v1868 = vld [vmem:[%s1854 + $0x34] sm:$0xf]
        %v1869 = vld [vmem:[%s1854 + $0x38] sm:$0xf]
        %v1870 = vld [vmem:[%s1854 + $0x3c] sm:$0xf]
        %s1871 = scalar_lea.vmem %s8, 1
        %v1872 = vld [vmem:[%s1871] sm:$0x1]
        %v1874 = vlaneseq
        %v1875 = vshrl.u32 %v1874, 7
        %v1876 = vsub.s32 0, %v1875
        %v1877 = vrot.slane %v1872, %v1876
        %v1895 = vunpack.c.l.b16 %v1855
        %v1896 = vunpack.c.l.b16 %v1856
        %v1897 = vunpack.c.l.b16 %v1857
        %v1898 = vunpack.c.l.b16 %v1858
        %v1899 = vunpack.c.l.b16 %v1859
        %v1900 = vunpack.c.l.b16 %v1860
        %v1901 = vunpack.c.l.b16 %v1861
        %v1902 = vunpack.c.l.b16 %v1862
        %v1903 = vunpack.c.l.b16 %v1863
        %v1904 = vunpack.c.l.b16 %v1864
        %v1905 = vunpack.c.l.b16 %v1865
        %v1906 = vunpack.c.l.b16 %v1866
        %v1907 = vunpack.c.l.b16 %v1867
        %v1908 = vunpack.c.l.b16 %v1868
        %v1909 = vunpack.c.l.b16 %v1869
        %v1910 = vunpack.c.l.b16 %v1870
        %v1911 = vpack.c.b16 %v1896, %v1895
        %v1912 = vpack.c.b16 %v1898, %v1897
        %v1913 = vpack.c.b16 %v1900, %v1899
        %v1914 = vpack.c.b16 %v1902, %v1901
        %v1915 = vpack.c.b16 %v1904, %v1903
        %v1916 = vpack.c.b16 %v1906, %v1905
        %v1917 = vpack.c.b16 %v1908, %v1907
        %v1918 = vpack.c.b16 %v1910, %v1909
        %1927 = vmatprep.subr.bf16.mxu0 0
        %1928 = vmatpush1.bf16.msra.mxu0 %v1911
        %1929 = vmatprep.subr.bf16.mxu0 0
        %1930 = vmatpush1.bf16.msra.mxu0 %v1912
        %1931 = vmatprep.subr.bf16.mxu0 0
        %1932 = vmatpush1.bf16.msra.mxu0 %v1913
        %1933 = vmatprep.subr.bf16.mxu0 0
        %1934 = vmatpush1.bf16.msra.mxu0 %v1914
        %1935 = vmatprep.subr.bf16.mxu0 0
        %1936 = vmatpush1.bf16.msra.mxu0 %v1915
        %1937 = vmatprep.subr.bf16.mxu0 0
        %1938 = vmatpush1.bf16.msra.mxu0 %v1916
        %1939 = vmatprep.subr.bf16.mxu0 0
        %1940 = vmatpush1.bf16.msra.mxu0 %v1917
        %1941 = vmatprep.subr.bf16.mxu0 0
        %1942 = vmatpush1.bf16.msra.mxu0 %v1918
        %1943 = vmatprep.subr.bf16.mxu0 0
        %1944 = vmatpush1.bf16.msra.mxu0 0
        %1945 = vmatprep.subr.bf16.mxu0 0
        %1946 = vmatpush1.bf16.msra.mxu0 0
        %1947 = vmatprep.subr.bf16.mxu0 0
        %1948 = vmatpush1.bf16.msra.mxu0 0
        %1949 = vmatprep.subr.bf16.mxu0 0
        %1950 = vmatpush1.bf16.msra.mxu0 0
        %1951 = vmatprep.subr.bf16.mxu0 0
        %1952 = vmatpush1.bf16.msra.mxu0 0
        %1953 = vmatprep.subr.bf16.mxu0 0
        %1954 = vmatpush1.bf16.msra.mxu0 0
        %1955 = vmatprep.subr.bf16.mxu0 0
        %1956 = vmatpush1.bf16.msra.mxu0 0
        %1957 = vmatprep.subr.bf16.mxu0 0
        %1958 = vmatpush1.bf16.msra.mxu0 0
        %1959 = vmatprep.mubr.bf16.mxu0 0
        %1960 = vmatmul.mubr.bf16.gmra.mrb[0].mxu0 %v1852
        %v1961 = vpop.f32.mrb[0].mxu0
        %v1962 = vadd.f32 %v1877, %v1961
        %v1963 = vpop.f32.mrb[0].mxu0
        %v1964 = vpop.f32.mrb[0].mxu0
        %v1965 = vadd.f32 %v1877, %v1964
        %v1966 = vpop.f32.mrb[0].mxu0
        %1967 = vmatprep.mubr.bf16.mxu0 0
        %1968 = vmatmul.mubr.bf16.gmra.mrb[0].mxu0 %v1853
        %v1969 = vpop.f32.mrb[0].mxu0
        %v1970 = vadd.f32 %v1877, %v1969
        %v1971 = vpop.f32.mrb[0].mxu0
        %v1972 = vpop.f32.mrb[0].mxu0
        %v1973 = vadd.f32 %v1877, %v1972
        %v1974 = vpop.f32.mrb[0].mxu0
        %1975 = vdwg.mxu0
        %v1976 = vmax.f32 %v1962, 0.0
        %v1977 = vmax.f32 %v1965, 0.0
        %v1978 = vmax.f32 %v1970, 0.0
        %v1979 = vmax.f32 %v1973, 0.0
        %v1980 = vpack.c.bf16 %v1977, %v1976
        %v1981 = vpack.c.bf16 %v1979, %v1978
        %v1982 = vld [vmem:[%s9] sm:$0xf]
        %v1983 = vld [vmem:[%s9 + $0x4] sm:$0xf]
        %v1984 = vld [vmem:[%s9 + $0x8] sm:$0xf]
        %v1985 = vld [vmem:[%s9 + $0xc] sm:$0xf]
        %v1986 = vld [vmem:[%s9 + $0x10] sm:$0xf]
        %v1987 = vld [vmem:[%s9 + $0x14] sm:$0xf]
        %v1988 = vld [vmem:[%s9 + $0x18] sm:$0xf]
        %v1989 = vld [vmem:[%s9 + $0x1c] sm:$0xf]
        %v1990 = vld [vmem:[%s9 + $0x20] sm:$0xf]
        %v1991 = vld [vmem:[%s9 + $0x24] sm:$0xf]
        %v1992 = vld [vmem:[%s9 + $0x28] sm:$0xf]
        %v1993 = vld [vmem:[%s9 + $0x2c] sm:$0xf]
        %v1994 = vld [vmem:[%s9 + $0x30] sm:$0xf]
        %v1995 = vld [vmem:[%s9 + $0x34] sm:$0xf]
        %v1996 = vld [vmem:[%s9 + $0x38] sm:$0xf]
        %v1997 = vld [vmem:[%s9 + $0x3c] sm:$0xf]
        %v1998 = vld [vmem:[%s10] sm:$0x1]
        %v2000 = vlaneseq
        %v2001 = vshrl.u32 %v2000, 7
        %v2002 = vsub.s32 0, %v2001
        %v2003 = vrot.slane %v1998, %v2002
        %v2021 = vunpack.c.l.b16 %v1982
        %v2022 = vunpack.c.l.b16 %v1983
        %v2023 = vunpack.c.l.b16 %v1984
        %v2024 = vunpack.c.l.b16 %v1985
        %v2025 = vunpack.c.l.b16 %v1986
        %v2026 = vunpack.c.l.b16 %v1987
        %v2027 = vunpack.c.l.b16 %v1988
        %v2028 = vunpack.c.l.b16 %v1989
        %v2029 = vunpack.c.l.b16 %v1990
        %v2030 = vunpack.c.l.b16 %v1991
        %v2031 = vunpack.c.l.b16 %v1992
        %v2032 = vunpack.c.l.b16 %v1993
        %v2033 = vunpack.c.l.b16 %v1994
        %v2034 = vunpack.c.l.b16 %v1995
        %v2035 = vunpack.c.l.b16 %v1996
        %v2036 = vunpack.c.l.b16 %v1997
        %v2037 = vpack.c.b16 %v2022, %v2021
        %v2038 = vpack.c.b16 %v2024, %v2023
        %v2039 = vpack.c.b16 %v2026, %v2025
        %v2040 = vpack.c.b16 %v2028, %v2027
        %v2041 = vpack.c.b16 %v2030, %v2029
        %v2042 = vpack.c.b16 %v2032, %v2031
        %v2043 = vpack.c.b16 %v2034, %v2033
        %v2044 = vpack.c.b16 %v2036, %v2035
        %2053 = vmatprep.subr.bf16.mxu0 0
        %2054 = vmatpush1.bf16.msra.mxu0 %v2037
        %2055 = vmatprep.subr.bf16.mxu0 0
        %2056 = vmatpush1.bf16.msra.mxu0 %v2038
        %2057 = vmatprep.subr.bf16.mxu0 0
        %2058 = vmatpush1.bf16.msra.mxu0 %v2039
        %2059 = vmatprep.subr.bf16.mxu0 0
        %2060 = vmatpush1.bf16.msra.mxu0 %v2040
        %2061 = vmatprep.subr.bf16.mxu0 0
        %2062 = vmatpush1.bf16.msra.mxu0 %v2041
        %2063 = vmatprep.subr.bf16.mxu0 0
        %2064 = vmatpush1.bf16.msra.mxu0 %v2042
        %2065 = vmatprep.subr.bf16.mxu0 0
        %2066 = vmatpush1.bf16.msra.mxu0 %v2043
        %2067 = vmatprep.subr.bf16.mxu0 0
        %2068 = vmatpush1.bf16.msra.mxu0 %v2044
        %2069 = vmatprep.subr.bf16.mxu0 0
        %2070 = vmatpush1.bf16.msra.mxu0 0
        %2071 = vmatprep.subr.bf16.mxu0 0
        %2072 = vmatpush1.bf16.msra.mxu0 0
        %2073 = vmatprep.subr.bf16.mxu0 0
        %2074 = vmatpush1.bf16.msra.mxu0 0
        %2075 = vmatprep.subr.bf16.mxu0 0
        %2076 = vmatpush1.bf16.msra.mxu0 0
        %2077 = vmatprep.subr.bf16.mxu0 0
        %2078 = vmatpush1.bf16.msra.mxu0 0
        %2079 = vmatprep.subr.bf16.mxu0 0
        %2080 = vmatpush1.bf16.msra.mxu0 0
        %2081 = vmatprep.subr.bf16.mxu0 0
        %2082 = vmatpush1.bf16.msra.mxu0 0
        %2083 = vmatprep.subr.bf16.mxu0 0
        %2084 = vmatpush1.bf16.msra.mxu0 0
        %2085 = vmatprep.mubr.bf16.mxu0 0
        %2086 = vmatmul.mubr.bf16.gmra.mrb[0].mxu0 %v1980
        %v2087 = vpop.f32.mrb[0].mxu0
        %v2088 = vadd.f32 %v2003, %v2087
        %v2089 = vpop.f32.mrb[0].mxu0
        %v2090 = vpop.f32.mrb[0].mxu0
        %v2091 = vadd.f32 %v2003, %v2090
        %v2092 = vpop.f32.mrb[0].mxu0
        %2093 = vmatprep.mubr.bf16.mxu0 0
        %2094 = vmatmul.mubr.bf16.gmra.mrb[0].mxu0 %v1981
        %v2095 = vpop.f32.mrb[0].mxu0
        %v2096 = vadd.f32 %v2003, %v2095
        %v2097 = vpop.f32.mrb[0].mxu0
        %v2098 = vpop.f32.mrb[0].mxu0
        %v2099 = vadd.f32 %v2003, %v2098
        %v2100 = vpop.f32.mrb[0].mxu0
        %2101 = vdwg.mxu0
        %2102 = vst [vmem:[%s420] sm:$0xff] %v2088
        %2103 = vst [vmem:[%s420 + $0x8] sm:$0xff] %v2091
        %2104 = vst [vmem:[%s420 + $0x10] sm:$0xff] %v2096
        %2105 = vst [vmem:[%s420 + $0x18] sm:$0xff] %v2099
        %s2106 = sand.u32 %s277, 1
        %s2107 = scalar_lea.sflag [#allocation4], %s2106
        %s2108 = sand.u32 %s277, 1
        %s2109 = smul.addr %s2108, 32
        %s2110 = scalar_lea.vmem [#allocation5], %s2109
        // Predicated region
        $region69: #{tpu_custom_call.1} parent=63 // pred_check
          %p2111 = pneg %p287
        $region70: #{tpu_custom_call.1} parent=63 // pred_check_branch
          %2113 = sbr.rel (%p2111) target = $region72
        $region71: #{tpu_custom_call.1} parent=63 // pred_region
          %s2114 = smul.u32 4, %s28
          %s2116 = ssub.s32 512, 512
          %2117 = vsyncadd %s2107, %s2116
          %s2118 = smul.addr %s2114, 128
          %s2119 = scalar_lea.hbm %s11, %s2118
          %s2120 = sshll.u32 %s2110, 4
          %s2121 = int_to_ptr.vmem [resolvable:$true] %s2120
          %2126 = dma.vmem_to_hbm [thread:$0]  %s2121, 512, %s2119, %s2107, 128, 128, 8
        $region72: #{tpu_custom_call.1} parent=63 // pred_fallthru
          _
      $region64: #{tpu_custom_call.1} parent=5 // pred_fallthru
        _
      %p2127 = scmp.le.s32.totalorder 2, %s23
      // Predicated region
      $region73: #{tpu_custom_call.1} parent=5 // pred_check
        %p2128 = pneg %p2127
      $region74: #{tpu_custom_call.1} parent=5 // pred_check_branch
        %2130 = sbr.rel (%p2128) target = $region76
      $region75: #{tpu_custom_call.1} parent=5 // pred_region
        %s2131 = ssub.s32 %s23, 2
        // Predicated region
        $region77: #{tpu_custom_call.1} parent=75 // pred_check
          %p2132 = pneg %p293
        $region78: #{tpu_custom_call.1} parent=75 // pred_check_branch
          %2134 = sbr.rel (%p2132) target = $region80
        $region79: #{tpu_custom_call.1} parent=75 // pred_region
          %s2135 = sand.u32 %s278, 1
          %s2136 = scalar_lea.sflag [#allocation4], %s2135
          %s2137 = sand.u32 %s278, 1
          %s2138 = smul.addr %s2137, 32
          %s2139 = scalar_lea.vmem [#allocation5], %s2138
          %2140 = dma.done %s2136, 512
        $region80: #{tpu_custom_call.1} parent=75 // pred_fallthru
          _
      $region76: #{tpu_custom_call.1} parent=5 // pred_fallthru
        _
    $region6: #{tpu_custom_call.1} parent=1 // loop_footer
      %s27 = sadd.s32 1, %s23
    $region7: #{tpu_custom_call.1} parent=1 // loop_footer_branch
      %22 = sbr.rel target = $region3
    $region8: #{tpu_custom_call.1} parent=1 // loop_exit
      _
    %2141 = vsyncpa [#allocation3], 1
    %s2142 = scalar_lea.sflag [#allocation3], 1
    %2143 = vsyncpa %s2142, 1
    %2144 = vsyncpa [#allocation4], 1
    %s2145 = scalar_lea.sflag [#allocation4], 1
    %2146 = vsyncpa %s2145, 1

</llo_original>
